<compile_context>
chip_gen: v5e
topology: v5e:2x2
jax: 0.10.0
libtpu: 0.0.40
codegen_flags: <defaults>
</compile_context>

<pallas_src>
import jax
import jax.numpy as jnp
from jax.experimental import pallas as pl
from jax.experimental.pallas import tpu as pltpu

# ---------------- sizes (small, deterministic) ----------------
B = 8        # batch (>= 8: full sublane occupancy)
T = 8        # sequence length
F_INT = 6    # len(config.INTERACTIVE_LIST)
F_CTY = 5    # len(config.COUNTY_LIST)
K = 8        # args.k (FM latent dim)
H = 32       # hidden_size
N_STATE = 5  # SEIIeR compartments [S, E, I, Ie, R]
N_OUT = 8    # packed output lanes: [S, E, I, Ie, R, betaI, betaIe, pad]

# SEIIeR constants
SIGMA = 1.0 / 5.0
GAMMA = 1.0 / 7.0
GAMMA_E = 1.0 / 10.0
RHO = 0.6

_CP = pltpu.CompilerParams(dimension_semantics=("arbitrary",))

SLAB_W = 8 * H  # 256 lanes


def _build_layout():
    """Row layout of the single packed parameter slab (each block 8-row aligned)."""
    layout = {}
    off = 0

    def add(name, rows, cols):
        nonlocal off
        layout[name] = (off, rows, cols)
        off += ((rows + 7) // 8) * 8

    add("Wih", F_INT, 8 * H)                   # (6, 256)  joint input->gates
    add("Whh", 2 * H, 8 * H)                   # (64, 256) block-diag hidden->gates
    add("b", 1, 8 * H)                         # (1, 256)
    add("W1", 2 * H + 2 * K, 2 * H)            # (80, 64)  fused [W1h; W1fc; W1fr]
    add("b1", 1, 2 * H)
    add("W2", 2 * H, 2 * H)                    # (64, 64)  block-diag
    add("b2", 1, 2 * H)
    add("Wo", 2 * H, 2)                        # (64, 2)   block-diag
    add("bo", 1, 2)
    add("We", T * B, F_INT)                    # (64, 6)   Embedding weights, row-expanded
    add("Wr", F_CTY, F_CTY)                    # (5, 5)
    add("br", 1, F_CTY)
    add("FM", 2 * F_INT + 2 * F_CTY, 4 * K)    # (22, 32)  block-diag fused FM RHS
    return layout, off


_LAYOUT, PROWS = _build_layout()


def _full_spec(shape):
    # full-array block (exempt from the (8,128) divisibility rule)
    return pl.BlockSpec(shape, lambda i, _n=len(shape): (0,) * _n)


# ---------------- fused kernel ----------------
def deep_hfmd_kernel(x_ref, region_ref, state_ref, params_ref, out_ref):
    f32 = jnp.float32

    def P(name):
        r0, rows, cols = _LAYOUT[name]
        return params_ref[r0:r0 + rows, 0:cols]          # static slice -> view

    x2d = x_ref[...]                                      # (T*B, F_INT), time-major rows

    # ---- Embedding: emb[b,f] = tanh( sum_t X[b,t,f] * We[t,f] ) -------------
    # We is row-expanded to (T*B, F_INT); the reduction over T is 7 VALU adds
    # of aligned 8-row slabs (no XLU sublane reduce).
    xw = x2d * P("We")
    acc = xw[0:B, :]
    for t in range(1, T):
        acc = acc + xw[t * B:(t + 1) * B, :]
    emb = jnp.tanh(acc)                                   # (B, F_INT)

    # ---- RegionEmbedding --------------------------------------------------
    emb_r = jnp.tanh(
        jnp.dot(region_ref[...], P("Wr"), preferred_element_type=f32) + P("br"))  # (B, F_CTY)

    # ---- both FMs fused into one MXU push ---------------------------------
    fm_lhs = jnp.concatenate([emb, emb * emb, emb_r, emb_r * emb_r], axis=1)  # (B, 22)
    fm_out = jnp.dot(fm_lhs, P("FM"), preferred_element_type=f32)             # (B, 4K)
    fm_case = 0.5 * (fm_out[:, 0:K] * fm_out[:, 0:K] - fm_out[:, K:2 * K])
    fm_reg = 0.5 * (fm_out[:, 2 * K:3 * K] * fm_out[:, 2 * K:3 * K]
                    - fm_out[:, 3 * K:4 * K])

    # ---- joint LSTM recurrence (modules I and Ie on lanes [0:H)/[H:2H)) ----
    whh = P("Whh")                                        # (2H, 8H) block-diagonal
    # hoisted input projection: ONE matmul for all T steps
    px_all = jnp.dot(x2d, P("Wih"), preferred_element_type=f32) + P("b")      # (T*B, 8H)

    h = jnp.zeros((B, 2 * H), f32)
    c = jnp.zeros((B, 2 * H), f32)
    for t in range(T):                                    # fully unrolled, static
        gates = px_all[t * B:(t + 1) * B, :] + jnp.dot(h, whh,
                                                       preferred_element_type=f32)
        i_g = jax.nn.sigmoid(gates[:, 0:2 * H])
        f_g = jax.nn.sigmoid(gates[:, 2 * H:4 * H])
        g_g = jnp.tanh(gates[:, 4 * H:6 * H])
        o_g = jax.nn.sigmoid(gates[:, 6 * H:8 * H])
        c = f_g * c + i_g * g_g
        h = o_g * jnp.tanh(c)

    # ---- joint MLP heads (dropout = no-op at inference) --------------------
    z_in = jnp.concatenate([h, fm_case, fm_reg], axis=1)                       # (B, 2H+2K)
    z = jnp.maximum(
        jnp.dot(z_in, P("W1"), preferred_element_type=f32) + P("b1"), 0.0)     # (B, 2H)
    z = jnp.maximum(
        jnp.dot(z, P("W2"), preferred_element_type=f32) + P("b2"), 0.0)
    beta = jax.nn.sigmoid(
        jnp.dot(z, P("Wo"), preferred_element_type=f32) + P("bo"))             # (B, 2)
    betaI = beta[:, 0:1]
    betaIe = beta[:, 1:2]

    # ---- epdemicSEIIeR: one explicit Euler step ----------------------------
    st = state_ref[...]
    S = st[:, 0:1]
    E = st[:, 1:2]
    I = st[:, 2:3]
    Ie = st[:, 3:4]
    R = st[:, 4:5]
    Npop = S + E + I + Ie + R
    N_safe = jnp.where(Npop == 0.0, 1.0, Npop)            # NaN guard
    new_e = (betaI * I + betaIe * Ie) * S / N_safe

    # single lane-packed store: [S, E, I, Ie, R, betaI, betaIe, pad]
    out_ref[...] = jnp.concatenate([
        S - new_e,
        E + new_e - SIGMA * E,
        I + RHO * SIGMA * E - GAMMA * I,
        Ie + (1.0 - RHO) * SIGMA * E - GAMMA_E * Ie,
        R + GAMMA * I + GAMMA_E * Ie,
        betaI,
        betaIe,
        jnp.zeros((B, 1), f32),
    ], axis=1)


# ---------------- DeepHFMD.forward (single fused pallas_call) ----------------
@jax.jit
def deep_hfmd_forward(param_slab, X, prev_state, region):
    # time-major, pre-flattened view of X (768 floats; negligible host cost)
    x2d = jnp.transpose(X, (1, 0, 2)).reshape(T * B, F_INT)
    out8 = pl.pallas_call(
        deep_hfmd_kernel,
        out_shape=jax.ShapeDtypeStruct((B, N_OUT), jnp.float32),
        grid=(1,),
        in_specs=[_full_spec((T * B, F_INT)),
                  _full_spec((B, F_CTY)),
                  _full_spec((B, N_STATE)),
                  _full_spec((PROWS, SLAB_W))],
        out_specs=_full_spec((B, N_OUT)),
        compiler_params=_CP,
    )(x2d, region, prev_state, param_slab)
    out = out8[:, :N_STATE]
    betaI = out8[:, N_STATE:N_STATE + 1]
    betaIe = out8[:, N_STATE + 1:N_STATE + 2]
    return out, betaI, betaIe


# ---------------- parameters ----------------
def init_params(key):
    ks = jax.random.split(key, 8)

    def rnd(k, shape, scale=0.1):
        return scale * jax.random.normal(k, shape, dtype=jnp.float32)

    p = {
        "We": rnd(ks[0], (T, F_INT)),          # Embedding temporal projection
        "Wr": rnd(ks[1], (F_CTY, F_CTY)),      # RegionEmbedding
        "br": rnd(ks[2], (1, F_CTY)),
        "v_case": rnd(ks[3], (F_INT, K)),      # FM(caseXnoaa).w2
        "v_region": rnd(ks[4], (F_CTY, K)),    # FM(region).w2
    }

    def lstm_nn_params(key):
        kk = jax.random.split(key, 10)
        return {
            "Wih": rnd(kk[0], (F_INT, 4 * H)),   # gate order (i, f, g, o)
            "Whh": rnd(kk[1], (H, 4 * H)),
            "b":   rnd(kk[2], (1, 4 * H)),
            "W1h": rnd(kk[3], (H, H)),
            "W1f": rnd(kk[4], (2 * K, H)),       # acts on cat(fm_case, fm_region)
            "b1":  rnd(kk[5], (1, H)),
            "W2":  rnd(kk[6], (H, H)),
            "b2":  rnd(kk[7], (1, H)),
            "Wo":  rnd(kk[8], (H, 1)),
            "bo":  rnd(kk[9], (1, 1)),
        }

    p["lstmI"] = lstm_nn_params(ks[5])
    p["lstmIe"] = lstm_nn_params(ks[6])
    return p


def pack_params(p):
    """Pack everything into one lane-dense (PROWS, 256) slab (single input DMA).

    The two LSTM_NN modules are packed jointly: gate columns re-ordered to
    [i_I i_Ie | f_I f_Ie | g_I g_Ie | o_I o_Ie], hidden state layout
    [module I | module Ie] on 2H lanes, Whh/W1h/W2/Wo block-diagonal.  This is
    numerically identical to running the two modules independently.
    """
    lI, lIe = p["lstmI"], p["lstmIe"]

    def gate_interleave(wI, wIe):                 # (..., 4H) x2 -> (..., 8H)
        parts = []
        for g in range(4):
            parts.append(wI[..., g * H:(g + 1) * H])
            parts.append(wIe[..., g * H:(g + 1) * H])
        return jnp.concatenate(parts, axis=-1)

    def block_diag2(aI, aIe):                     # (r, c) x2 -> (2r, 2c)
        top = jnp.concatenate([aI, jnp.zeros((aI.shape[0], aIe.shape[1]), jnp.float32)], axis=1)
        bot = jnp.concatenate([jnp.zeros((aIe.shape[0], aI.shape[1]), jnp.float32), aIe], axis=1)
        return jnp.concatenate([top, bot], axis=0)

    whh = jnp.zeros((2 * H, 8 * H), jnp.float32)
    for g in range(4):
        whh = whh.at[0:H, (2 * g) * H:(2 * g + 1) * H].set(lI["Whh"][:, g * H:(g + 1) * H])
        whh = whh.at[H:2 * H, (2 * g + 1) * H:(2 * g + 2) * H].set(lIe["Whh"][:, g * H:(g + 1) * H])

    # fused MLP first layer: rows ordered to match [h | fm_case | fm_reg]
    W1h = block_diag2(lI["W1h"], lIe["W1h"])                                  # (2H, 2H)
    W1fc = jnp.concatenate([lI["W1f"][:K], lIe["W1f"][:K]], axis=1)           # (K, 2H)
    W1fr = jnp.concatenate([lI["W1f"][K:], lIe["W1f"][K:]], axis=1)           # (K, 2H)
    W1 = jnp.concatenate([W1h, W1fc, W1fr], axis=0)                           # (2H+2K, 2H)

    # fused FM RHS (block diagonal): LHS in-kernel is [emb, emb^2, emb_r, emb_r^2]
    fm_rhs = jnp.zeros((2 * F_INT + 2 * F_CTY, 4 * K), jnp.float32)
    fm_rhs = fm_rhs.at[0:F_INT, 0:K].set(p["v_case"])
    fm_rhs = fm_rhs.at[F_INT:2 * F_INT, K:2 * K].set(p["v_case"] ** 2)
    fm_rhs = fm_rhs.at[2 * F_INT:2 * F_INT + F_CTY, 2 * K:3 * K].set(p["v_region"])
    fm_rhs = fm_rhs.at[2 * F_INT + F_CTY:, 3 * K:4 * K].set(p["v_region"] ** 2)

    tensors = {
        "Wih": gate_interleave(lI["Wih"], lIe["Wih"]),
        "Whh": whh,
        "b":   gate_interleave(lI["b"], lIe["b"]),
        "W1":  W1,
        "b1":  jnp.concatenate([lI["b1"], lIe["b1"]], axis=1),
        "W2":  block_diag2(lI["W2"], lIe["W2"]),
        "b2":  jnp.concatenate([lI["b2"], lIe["b2"]], axis=1),
        "Wo":  block_diag2(lI["Wo"], lIe["Wo"]),
        "bo":  jnp.concatenate([lI["bo"], lIe["bo"]], axis=1),
        "We":  jnp.repeat(p["We"], B, axis=0),        # row t*B+b holds We[t]
        "Wr":  p["Wr"],
        "br":  p["br"],
        "FM":  fm_rhs,
    }

    slab = jnp.zeros((PROWS, SLAB_W), jnp.float32)
    for name, (r0, rows, cols) in _LAYOUT.items():
        t = tensors[name]
        assert t.shape == (rows, cols), (name, t.shape, (rows, cols))
        slab = slab.at[r0:r0 + rows, 0:cols].set(t)
    return slab


if __name__ == "__main__":
    key = jax.random.PRNGKey(0)
    kx, kr, ks = jax.random.split(key, 3)
    X = jax.random.uniform(kx, (B, T, F_INT), dtype=jnp.float32)
    region = jax.random.uniform(kr, (B, F_CTY), dtype=jnp.float32)
    prev_state = (jax.nn.softmax(jax.random.normal(ks, (B, N_STATE)), axis=-1)
                  * 1000.0).astype(jnp.float32)

    params = init_params(jax.random.PRNGKey(1))
    slab = pack_params(params)

    out, betaI, betaIe = deep_hfmd_forward(slab, X, prev_state, region)
    jax.block_until_ready((out, betaI, betaIe))
    assert out.shape == (B, N_STATE)
    assert betaI.shape == (B, 1) and betaIe.shape == (B, 1)
    assert bool(jnp.all(jnp.isfinite(out)))
    assert bool(jnp.all((betaI >= 0.0) & (betaI <= 1.0)))
    print("KERNEL_OK")
</pallas_src>

<mosaic_0001>
module attributes {stable_mosaic.version = 11 : i64} {
  func.func @deep_hfmd_kernel(%arg0: i32, %arg1: memref<64x6xf32, #tpu.memory_space<vmem>>, %arg2: memref<8x5xf32, #tpu.memory_space<vmem>>, %arg3: memref<8x5xf32, #tpu.memory_space<vmem>>, %arg4: memref<416x256xf32, #tpu.memory_space<vmem>>, %arg5: memref<8x8xf32, #tpu.memory_space<vmem>>) attributes {dimension_semantics = [#tpu.dimension_semantics<arbitrary>], iteration_bounds = array<i64: 1>, scalar_prefetch = 0 : i64, scratch_operands = 0 : i64, tpu.core_type = #tpu.core_type<tc>, window_params = [{pipeline_mode = #tpu.pipeline_mode<synchronous>, transform_indices = @transform_0, window_bounds = array<i64: 64, 6>}, {pipeline_mode = #tpu.pipeline_mode<synchronous>, transform_indices = @transform_1, window_bounds = array<i64: 8, 5>}, {pipeline_mode = #tpu.pipeline_mode<synchronous>, transform_indices = @transform_2, window_bounds = array<i64: 8, 5>}, {pipeline_mode = #tpu.pipeline_mode<synchronous>, transform_indices = @transform_3, window_bounds = array<i64: 416, 256>}, {pipeline_mode = #tpu.pipeline_mode<synchronous>, transform_indices = @transform_4, window_bounds = array<i64: 8, 8>}]} {
    %c0 = arith.constant 0 : index
    %c0_0 = arith.constant 0 : index
    %0 = vector.load %arg1[%c0, %c0_0] : memref<64x6xf32, #tpu.memory_space<vmem>>, vector<64x6xf32>
    %c312 = arith.constant 312 : index
    %c0_1 = arith.constant 0 : index
    %1 = vector.load %arg4[%c312, %c0_1] : memref<416x256xf32, #tpu.memory_space<vmem>>, vector<64x6xf32>
    %2 = arith.mulf %0, %1 : vector<64x6xf32>
    %3 = vector.extract_strided_slice %2 {offsets = [0, 0], sizes = [8, 6], strides = [1, 1]} : vector<64x6xf32> to vector<8x6xf32>
    %4 = vector.extract_strided_slice %2 {offsets = [8, 0], sizes = [8, 6], strides = [1, 1]} : vector<64x6xf32> to vector<8x6xf32>
    %5 = arith.addf %3, %4 : vector<8x6xf32>
    %6 = vector.extract_strided_slice %2 {offsets = [16, 0], sizes = [8, 6], strides = [1, 1]} : vector<64x6xf32> to vector<8x6xf32>
    %7 = arith.addf %5, %6 : vector<8x6xf32>
    %8 = vector.extract_strided_slice %2 {offsets = [24, 0], sizes = [8, 6], strides = [1, 1]} : vector<64x6xf32> to vector<8x6xf32>
    %9 = arith.addf %7, %8 : vector<8x6xf32>
    %10 = vector.extract_strided_slice %2 {offsets = [32, 0], sizes = [8, 6], strides = [1, 1]} : vector<64x6xf32> to vector<8x6xf32>
    %11 = arith.addf %9, %10 : vector<8x6xf32>
    %12 = vector.extract_strided_slice %2 {offsets = [40, 0], sizes = [8, 6], strides = [1, 1]} : vector<64x6xf32> to vector<8x6xf32>
    %13 = arith.addf %11, %12 : vector<8x6xf32>
    %14 = vector.extract_strided_slice %2 {offsets = [48, 0], sizes = [8, 6], strides = [1, 1]} : vector<64x6xf32> to vector<8x6xf32>
    %15 = arith.addf %13, %14 : vector<8x6xf32>
    %16 = vector.extract_strided_slice %2 {offsets = [56, 0], sizes = [8, 6], strides = [1, 1]} : vector<64x6xf32> to vector<8x6xf32>
    %17 = arith.addf %15, %16 : vector<8x6xf32>
    %18 = math.tanh %17 : vector<8x6xf32>
    %c0_2 = arith.constant 0 : index
    %c0_3 = arith.constant 0 : index
    %19 = vector.load %arg2[%c0_2, %c0_3] : memref<8x5xf32, #tpu.memory_space<vmem>>, vector<8x5xf32>
    %c376 = arith.constant 376 : index
    %c0_4 = arith.constant 0 : index
    %20 = vector.load %arg4[%c376, %c0_4] : memref<416x256xf32, #tpu.memory_space<vmem>>, vector<5x5xf32>
    %cst = arith.constant dense<0.000000e+00> : vector<8x5xf32>
    %21 = tpu.matmul %19, %20, %cst {dimension_numbers = #tpu.dot_dimension_numbers<[1], [0], [0], [1], [0, 0, 1, 1], [], []>} : vector<8x5xf32>, vector<5x5xf32>, vector<8x5xf32> -> vector<8x5xf32>
    %c384 = arith.constant 384 : index
    %c0_5 = arith.constant 0 : index
    %22 = vector.load %arg4[%c384, %c0_5] : memref<416x256xf32, #tpu.memory_space<vmem>>, vector<1x5xf32>
    %23 = vector.broadcast %22 : vector<1x5xf32> to vector<8x5xf32>
    %24 = arith.addf %21, %23 : vector<8x5xf32>
    %25 = math.tanh %24 : vector<8x5xf32>
    %26 = arith.mulf %18, %18 : vector<8x6xf32>
    %27 = arith.mulf %25, %25 : vector<8x5xf32>
    %28 = tpu.concatenate %18, %26, %25, %27 in 1 : vector<8x6xf32>, vector<8x6xf32>, vector<8x5xf32>, vector<8x5xf32> -> vector<8x22xf32>
    %c392 = arith.constant 392 : index
    %c0_6 = arith.constant 0 : index
    %29 = vector.load %arg4[%c392, %c0_6] : memref<416x256xf32, #tpu.memory_space<vmem>>, vector<22x32xf32>
    %cst_7 = arith.constant dense<0.000000e+00> : vector<8x32xf32>
    %30 = tpu.matmul %28, %29, %cst_7 {dimension_numbers = #tpu.dot_dimension_numbers<[1], [0], [0], [1], [0, 0, 1, 1], [], []>} : vector<8x22xf32>, vector<22x32xf32>, vector<8x32xf32> -> vector<8x32xf32>
    %31 = vector.extract_strided_slice %30 {offsets = [0, 0], sizes = [8, 8], strides = [1, 1]} : vector<8x32xf32> to vector<8x8xf32>
    %32 = vector.extract_strided_slice %30 {offsets = [0, 0], sizes = [8, 8], strides = [1, 1]} : vector<8x32xf32> to vector<8x8xf32>
    %33 = arith.mulf %31, %32 : vector<8x8xf32>
    %34 = vector.extract_strided_slice %30 {offsets = [0, 8], sizes = [8, 8], strides = [1, 1]} : vector<8x32xf32> to vector<8x8xf32>
    %35 = arith.subf %33, %34 : vector<8x8xf32>
    %cst_8 = arith.constant 5.000000e-01 : f32
    %36 = vector.broadcast %cst_8 : f32 to vector<8x8xf32>
    %37 = arith.mulf %36, %35 : vector<8x8xf32>
    %38 = vector.extract_strided_slice %30 {offsets = [0, 16], sizes = [8, 8], strides = [1, 1]} : vector<8x32xf32> to vector<8x8xf32>
    %39 = vector.extract_strided_slice %30 {offsets = [0, 16], sizes = [8, 8], strides = [1, 1]} : vector<8x32xf32> to vector<8x8xf32>
    %40 = arith.mulf %38, %39 : vector<8x8xf32>
    %41 = vector.extract_strided_slice %30 {offsets = [0, 24], sizes = [8, 8], strides = [1, 1]} : vector<8x32xf32> to vector<8x8xf32>
    %42 = arith.subf %40, %41 : vector<8x8xf32>
    %cst_9 = arith.constant 5.000000e-01 : f32
    %43 = vector.broadcast %cst_9 : f32 to vector<8x8xf32>
    %44 = arith.mulf %43, %42 : vector<8x8xf32>
    %c8 = arith.constant 8 : index
    %c0_10 = arith.constant 0 : index
    %45 = vector.load %arg4[%c8, %c0_10] : memref<416x256xf32, #tpu.memory_space<vmem>>, vector<64x256xf32>
    %c0_11 = arith.constant 0 : index
    %c0_12 = arith.constant 0 : index
    %46 = vector.load %arg4[%c0_11, %c0_12] : memref<416x256xf32, #tpu.memory_space<vmem>>, vector<6x256xf32>
    %cst_13 = arith.constant dense<0.000000e+00> : vector<64x256xf32>
    %47 = tpu.matmul %0, %46, %cst_13 {dimension_numbers = #tpu.dot_dimension_numbers<[1], [0], [0], [1], [0, 0, 1, 1], [], []>} : vector<64x6xf32>, vector<6x256xf32>, vector<64x256xf32> -> vector<64x256xf32>
    %c72 = arith.constant 72 : index
    %c0_14 = arith.constant 0 : index
    %48 = vector.load %arg4[%c72, %c0_14] : memref<416x256xf32, #tpu.memory_space<vmem>>, vector<1x256xf32>
    %49 = vector.broadcast %48 : vector<1x256xf32> to vector<64x256xf32>
    %50 = arith.addf %47, %49 : vector<64x256xf32>
    %cst_15 = arith.constant 0.000000e+00 : f32
    %51 = vector.broadcast %cst_15 : f32 to vector<8x64xf32>
    %cst_16 = arith.constant 0.000000e+00 : f32
    %52 = vector.broadcast %cst_16 : f32 to vector<8x64xf32>
    %53 = vector.extract_strided_slice %50 {offsets = [0, 0], sizes = [8, 256], strides = [1, 1]} : vector<64x256xf32> to vector<8x256xf32>
    %cst_17 = arith.constant dense<0.000000e+00> : vector<8x256xf32>
    %54 = tpu.matmul %51, %45, %cst_17 {dimension_numbers = #tpu.dot_dimension_numbers<[1], [0], [0], [1], [0, 0, 1, 1], [], []>} : vector<8x64xf32>, vector<64x256xf32>, vector<8x256xf32> -> vector<8x256xf32>
    %55 = arith.addf %53, %54 : vector<8x256xf32>
    %56 = vector.extract_strided_slice %55 {offsets = [0, 0], sizes = [8, 64], strides = [1, 1]} : vector<8x256xf32> to vector<8x64xf32>
    %57 = arith.negf %56 : vector<8x64xf32>
    %58 = math.exp %57 : vector<8x64xf32>
    %cst_18 = arith.constant 1.000000e+00 : f32
    %59 = vector.broadcast %cst_18 : f32 to vector<8x64xf32>
    %60 = arith.addf %59, %58 : vector<8x64xf32>
    %61 = arith.divf %59, %60 : vector<8x64xf32>
    %62 = vector.extract_strided_slice %55 {offsets = [0, 64], sizes = [8, 64], strides = [1, 1]} : vector<8x256xf32> to vector<8x64xf32>
    %63 = arith.negf %62 : vector<8x64xf32>
    %64 = math.exp %63 : vector<8x64xf32>
    %cst_19 = arith.constant 1.000000e+00 : f32
    %65 = vector.broadcast %cst_19 : f32 to vector<8x64xf32>
    %66 = arith.addf %65, %64 : vector<8x64xf32>
    %67 = arith.divf %65, %66 : vector<8x64xf32>
    %68 = vector.extract_strided_slice %55 {offsets = [0, 128], sizes = [8, 64], strides = [1, 1]} : vector<8x256xf32> to vector<8x64xf32>
    %69 = math.tanh %68 : vector<8x64xf32>
    %70 = vector.extract_strided_slice %55 {offsets = [0, 192], sizes = [8, 64], strides = [1, 1]} : vector<8x256xf32> to vector<8x64xf32>
    %71 = arith.negf %70 : vector<8x64xf32>
    %72 = math.exp %71 : vector<8x64xf32>
    %cst_20 = arith.constant 1.000000e+00 : f32
    %73 = vector.broadcast %cst_20 : f32 to vector<8x64xf32>
    %74 = arith.addf %73, %72 : vector<8x64xf32>
    %75 = arith.divf %73, %74 : vector<8x64xf32>
    %76 = arith.mulf %67, %52 : vector<8x64xf32>
    %77 = arith.mulf %61, %69 : vector<8x64xf32>
    %78 = arith.addf %76, %77 : vector<8x64xf32>
    %79 = math.tanh %78 : vector<8x64xf32>
    %80 = arith.mulf %75, %79 : vector<8x64xf32>
    %81 = vector.extract_strided_slice %50 {offsets = [8, 0], sizes = [8, 256], strides = [1, 1]} : vector<64x256xf32> to vector<8x256xf32>
    %cst_21 = arith.constant dense<0.000000e+00> : vector<8x256xf32>
    %82 = tpu.matmul %80, %45, %cst_21 {dimension_numbers = #tpu.dot_dimension_numbers<[1], [0], [0], [1], [0, 0, 1, 1], [], []>} : vector<8x64xf32>, vector<64x256xf32>, vector<8x256xf32> -> vector<8x256xf32>
    %83 = arith.addf %81, %82 : vector<8x256xf32>
    %84 = vector.extract_strided_slice %83 {offsets = [0, 0], sizes = [8, 64], strides = [1, 1]} : vector<8x256xf32> to vector<8x64xf32>
    %85 = arith.negf %84 : vector<8x64xf32>
    %86 = math.exp %85 : vector<8x64xf32>
    %cst_22 = arith.constant 1.000000e+00 : f32
    %87 = vector.broadcast %cst_22 : f32 to vector<8x64xf32>
    %88 = arith.addf %87, %86 : vector<8x64xf32>
    %89 = arith.divf %87, %88 : vector<8x64xf32>
    %90 = vector.extract_strided_slice %83 {offsets = [0, 64], sizes = [8, 64], strides = [1, 1]} : vector<8x256xf32> to vector<8x64xf32>
    %91 = arith.negf %90 : vector<8x64xf32>
    %92 = math.exp %91 : vector<8x64xf32>
    %cst_23 = arith.constant 1.000000e+00 : f32
    %93 = vector.broadcast %cst_23 : f32 to vector<8x64xf32>
    %94 = arith.addf %93, %92 : vector<8x64xf32>
    %95 = arith.divf %93, %94 : vector<8x64xf32>
    %96 = vector.extract_strided_slice %83 {offsets = [0, 128], sizes = [8, 64], strides = [1, 1]} : vector<8x256xf32> to vector<8x64xf32>
    %97 = math.tanh %96 : vector<8x64xf32>
    %98 = vector.extract_strided_slice %83 {offsets = [0, 192], sizes = [8, 64], strides = [1, 1]} : vector<8x256xf32> to vector<8x64xf32>
    %99 = arith.negf %98 : vector<8x64xf32>
    %100 = math.exp %99 : vector<8x64xf32>
    %cst_24 = arith.constant 1.000000e+00 : f32
    %101 = vector.broadcast %cst_24 : f32 to vector<8x64xf32>
    %102 = arith.addf %101, %100 : vector<8x64xf32>
    %103 = arith.divf %101, %102 : vector<8x64xf32>
    %104 = arith.mulf %95, %78 : vector<8x64xf32>
    %105 = arith.mulf %89, %97 : vector<8x64xf32>
    %106 = arith.addf %104, %105 : vector<8x64xf32>
    %107 = math.tanh %106 : vector<8x64xf32>
    %108 = arith.mulf %103, %107 : vector<8x64xf32>
    %109 = vector.extract_strided_slice %50 {offsets = [16, 0], sizes = [8, 256], strides = [1, 1]} : vector<64x256xf32> to vector<8x256xf32>
    %cst_25 = arith.constant dense<0.000000e+00> : vector<8x256xf32>
    %110 = tpu.matmul %108, %45, %cst_25 {dimension_numbers = #tpu.dot_dimension_numbers<[1], [0], [0], [1], [0, 0, 1, 1], [], []>} : vector<8x64xf32>, vector<64x256xf32>, vector<8x256xf32> -> vector<8x256xf32>
    %111 = arith.addf %109, %110 : vector<8x256xf32>
    %112 = vector.extract_strided_slice %111 {offsets = [0, 0], sizes = [8, 64], strides = [1, 1]} : vector<8x256xf32> to vector<8x64xf32>
    %113 = arith.negf %112 : vector<8x64xf32>
    %114 = math.exp %113 : vector<8x64xf32>
    %cst_26 = arith.constant 1.000000e+00 : f32
    %115 = vector.broadcast %cst_26 : f32 to vector<8x64xf32>
    %116 = arith.addf %115, %114 : vector<8x64xf32>
    %117 = arith.divf %115, %116 : vector<8x64xf32>
    %118 = vector.extract_strided_slice %111 {offsets = [0, 64], sizes = [8, 64], strides = [1, 1]} : vector<8x256xf32> to vector<8x64xf32>
    %119 = arith.negf %118 : vector<8x64xf32>
    %120 = math.exp %119 : vector<8x64xf32>
    %cst_27 = arith.constant 1.000000e+00 : f32
    %121 = vector.broadcast %cst_27 : f32 to vector<8x64xf32>
    %122 = arith.addf %121, %120 : vector<8x64xf32>
    %123 = arith.divf %121, %122 : vector<8x64xf32>
    %124 = vector.extract_strided_slice %111 {offsets = [0, 128], sizes = [8, 64], strides = [1, 1]} : vector<8x256xf32> to vector<8x64xf32>
    %125 = math.tanh %124 : vector<8x64xf32>
    %126 = vector.extract_strided_slice %111 {offsets = [0, 192], sizes = [8, 64], strides = [1, 1]} : vector<8x256xf32> to vector<8x64xf32>
    %127 = arith.negf %126 : vector<8x64xf32>
    %128 = math.exp %127 : vector<8x64xf32>
    %cst_28 = arith.constant 1.000000e+00 : f32
    %129 = vector.broadcast %cst_28 : f32 to vector<8x64xf32>
    %130 = arith.addf %129, %128 : vector<8x64xf32>
    %131 = arith.divf %129, %130 : vector<8x64xf32>
    %132 = arith.mulf %123, %106 : vector<8x64xf32>
    %133 = arith.mulf %117, %125 : vector<8x64xf32>
    %134 = arith.addf %132, %133 : vector<8x64xf32>
    %135 = math.tanh %134 : vector<8x64xf32>
    %136 = arith.mulf %131, %135 : vector<8x64xf32>
    %137 = vector.extract_strided_slice %50 {offsets = [24, 0], sizes = [8, 256], strides = [1, 1]} : vector<64x256xf32> to vector<8x256xf32>
    %cst_29 = arith.constant dense<0.000000e+00> : vector<8x256xf32>
    %138 = tpu.matmul %136, %45, %cst_29 {dimension_numbers = #tpu.dot_dimension_numbers<[1], [0], [0], [1], [0, 0, 1, 1], [], []>} : vector<8x64xf32>, vector<64x256xf32>, vector<8x256xf32> -> vector<8x256xf32>
    %139 = arith.addf %137, %138 : vector<8x256xf32>
    %140 = vector.extract_strided_slice %139 {offsets = [0, 0], sizes = [8, 64], strides = [1, 1]} : vector<8x256xf32> to vector<8x64xf32>
    %141 = arith.negf %140 : vector<8x64xf32>
    %142 = math.exp %141 : vector<8x64xf32>
    %cst_30 = arith.constant 1.000000e+00 : f32
    %143 = vector.broadcast %cst_30 : f32 to vector<8x64xf32>
    %144 = arith.addf %143, %142 : vector<8x64xf32>
    %145 = arith.divf %143, %144 : vector<8x64xf32>
    %146 = vector.extract_strided_slice %139 {offsets = [0, 64], sizes = [8, 64], strides = [1, 1]} : vector<8x256xf32> to vector<8x64xf32>
    %147 = arith.negf %146 : vector<8x64xf32>
    %148 = math.exp %147 : vector<8x64xf32>
    %cst_31 = arith.constant 1.000000e+00 : f32
    %149 = vector.broadcast %cst_31 : f32 to vector<8x64xf32>
    %150 = arith.addf %149, %148 : vector<8x64xf32>
    %151 = arith.divf %149, %150 : vector<8x64xf32>
    %152 = vector.extract_strided_slice %139 {offsets = [0, 128], sizes = [8, 64], strides = [1, 1]} : vector<8x256xf32> to vector<8x64xf32>
    %153 = math.tanh %152 : vector<8x64xf32>
    %154 = vector.extract_strided_slice %139 {offsets = [0, 192], sizes = [8, 64], strides = [1, 1]} : vector<8x256xf32> to vector<8x64xf32>
    %155 = arith.negf %154 : vector<8x64xf32>
    %156 = math.exp %155 : vector<8x64xf32>
    %cst_32 = arith.constant 1.000000e+00 : f32
    %157 = vector.broadcast %cst_32 : f32 to vector<8x64xf32>
    %158 = arith.addf %157, %156 : vector<8x64xf32>
    %159 = arith.divf %157, %158 : vector<8x64xf32>
    %160 = arith.mulf %151, %134 : vector<8x64xf32>
    %161 = arith.mulf %145, %153 : vector<8x64xf32>
    %162 = arith.addf %160, %161 : vector<8x64xf32>
    %163 = math.tanh %162 : vector<8x64xf32>
    %164 = arith.mulf %159, %163 : vector<8x64xf32>
    %165 = vector.extract_strided_slice %50 {offsets = [32, 0], sizes = [8, 256], strides = [1, 1]} : vector<64x256xf32> to vector<8x256xf32>
    %cst_33 = arith.constant dense<0.000000e+00> : vector<8x256xf32>
    %166 = tpu.matmul %164, %45, %cst_33 {dimension_numbers = #tpu.dot_dimension_numbers<[1], [0], [0], [1], [0, 0, 1, 1], [], []>} : vector<8x64xf32>, vector<64x256xf32>, vector<8x256xf32> -> vector<8x256xf32>
    %167 = arith.addf %165, %166 : vector<8x256xf32>
    %168 = vector.extract_strided_slice %167 {offsets = [0, 0], sizes = [8, 64], strides = [1, 1]} : vector<8x256xf32> to vector<8x64xf32>
    %169 = arith.negf %168 : vector<8x64xf32>
    %170 = math.exp %169 : vector<8x64xf32>
    %cst_34 = arith.constant 1.000000e+00 : f32
    %171 = vector.broadcast %cst_34 : f32 to vector<8x64xf32>
    %172 = arith.addf %171, %170 : vector<8x64xf32>
    %173 = arith.divf %171, %172 : vector<8x64xf32>
    %174 = vector.extract_strided_slice %167 {offsets = [0, 64], sizes = [8, 64], strides = [1, 1]} : vector<8x256xf32> to vector<8x64xf32>
    %175 = arith.negf %174 : vector<8x64xf32>
    %176 = math.exp %175 : vector<8x64xf32>
    %cst_35 = arith.constant 1.000000e+00 : f32
    %177 = vector.broadcast %cst_35 : f32 to vector<8x64xf32>
    %178 = arith.addf %177, %176 : vector<8x64xf32>
    %179 = arith.divf %177, %178 : vector<8x64xf32>
    %180 = vector.extract_strided_slice %167 {offsets = [0, 128], sizes = [8, 64], strides = [1, 1]} : vector<8x256xf32> to vector<8x64xf32>
    %181 = math.tanh %180 : vector<8x64xf32>
    %182 = vector.extract_strided_slice %167 {offsets = [0, 192], sizes = [8, 64], strides = [1, 1]} : vector<8x256xf32> to vector<8x64xf32>
    %183 = arith.negf %182 : vector<8x64xf32>
    %184 = math.exp %183 : vector<8x64xf32>
    %cst_36 = arith.constant 1.000000e+00 : f32
    %185 = vector.broadcast %cst_36 : f32 to vector<8x64xf32>
    %186 = arith.addf %185, %184 : vector<8x64xf32>
    %187 = arith.divf %185, %186 : vector<8x64xf32>
    %188 = arith.mulf %179, %162 : vector<8x64xf32>
    %189 = arith.mulf %173, %181 : vector<8x64xf32>
    %190 = arith.addf %188, %189 : vector<8x64xf32>
    %191 = math.tanh %190 : vector<8x64xf32>
    %192 = arith.mulf %187, %191 : vector<8x64xf32>
    %193 = vector.extract_strided_slice %50 {offsets = [40, 0], sizes = [8, 256], strides = [1, 1]} : vector<64x256xf32> to vector<8x256xf32>
    %cst_37 = arith.constant dense<0.000000e+00> : vector<8x256xf32>
    %194 = tpu.matmul %192, %45, %cst_37 {dimension_numbers = #tpu.dot_dimension_numbers<[1], [0], [0], [1], [0, 0, 1, 1], [], []>} : vector<8x64xf32>, vector<64x256xf32>, vector<8x256xf32> -> vector<8x256xf32>
    %195 = arith.addf %193, %194 : vector<8x256xf32>
    %196 = vector.extract_strided_slice %195 {offsets = [0, 0], sizes = [8, 64], strides = [1, 1]} : vector<8x256xf32> to vector<8x64xf32>
    %197 = arith.negf %196 : vector<8x64xf32>
    %198 = math.exp %197 : vector<8x64xf32>
    %cst_38 = arith.constant 1.000000e+00 : f32
    %199 = vector.broadcast %cst_38 : f32 to vector<8x64xf32>
    %200 = arith.addf %199, %198 : vector<8x64xf32>
    %201 = arith.divf %199, %200 : vector<8x64xf32>
    %202 = vector.extract_strided_slice %195 {offsets = [0, 64], sizes = [8, 64], strides = [1, 1]} : vector<8x256xf32> to vector<8x64xf32>
    %203 = arith.negf %202 : vector<8x64xf32>
    %204 = math.exp %203 : vector<8x64xf32>
    %cst_39 = arith.constant 1.000000e+00 : f32
    %205 = vector.broadcast %cst_39 : f32 to vector<8x64xf32>
    %206 = arith.addf %205, %204 : vector<8x64xf32>
    %207 = arith.divf %205, %206 : vector<8x64xf32>
    %208 = vector.extract_strided_slice %195 {offsets = [0, 128], sizes = [8, 64], strides = [1, 1]} : vector<8x256xf32> to vector<8x64xf32>
    %209 = math.tanh %208 : vector<8x64xf32>
    %210 = vector.extract_strided_slice %195 {offsets = [0, 192], sizes = [8, 64], strides = [1, 1]} : vector<8x256xf32> to vector<8x64xf32>
    %211 = arith.negf %210 : vector<8x64xf32>
    %212 = math.exp %211 : vector<8x64xf32>
    %cst_40 = arith.constant 1.000000e+00 : f32
    %213 = vector.broadcast %cst_40 : f32 to vector<8x64xf32>
    %214 = arith.addf %213, %212 : vector<8x64xf32>
    %215 = arith.divf %213, %214 : vector<8x64xf32>
    %216 = arith.mulf %207, %190 : vector<8x64xf32>
    %217 = arith.mulf %201, %209 : vector<8x64xf32>
    %218 = arith.addf %216, %217 : vector<8x64xf32>
    %219 = math.tanh %218 : vector<8x64xf32>
    %220 = arith.mulf %215, %219 : vector<8x64xf32>
    %221 = vector.extract_strided_slice %50 {offsets = [48, 0], sizes = [8, 256], strides = [1, 1]} : vector<64x256xf32> to vector<8x256xf32>
    %cst_41 = arith.constant dense<0.000000e+00> : vector<8x256xf32>
    %222 = tpu.matmul %220, %45, %cst_41 {dimension_numbers = #tpu.dot_dimension_numbers<[1], [0], [0], [1], [0, 0, 1, 1], [], []>} : vector<8x64xf32>, vector<64x256xf32>, vector<8x256xf32> -> vector<8x256xf32>
    %223 = arith.addf %221, %222 : vector<8x256xf32>
    %224 = vector.extract_strided_slice %223 {offsets = [0, 0], sizes = [8, 64], strides = [1, 1]} : vector<8x256xf32> to vector<8x64xf32>
    %225 = arith.negf %224 : vector<8x64xf32>
    %226 = math.exp %225 : vector<8x64xf32>
    %cst_42 = arith.constant 1.000000e+00 : f32
    %227 = vector.broadcast %cst_42 : f32 to vector<8x64xf32>
    %228 = arith.addf %227, %226 : vector<8x64xf32>
    %229 = arith.divf %227, %228 : vector<8x64xf32>
    %230 = vector.extract_strided_slice %223 {offsets = [0, 64], sizes = [8, 64], strides = [1, 1]} : vector<8x256xf32> to vector<8x64xf32>
    %231 = arith.negf %230 : vector<8x64xf32>
    %232 = math.exp %231 : vector<8x64xf32>
    %cst_43 = arith.constant 1.000000e+00 : f32
    %233 = vector.broadcast %cst_43 : f32 to vector<8x64xf32>
    %234 = arith.addf %233, %232 : vector<8x64xf32>
    %235 = arith.divf %233, %234 : vector<8x64xf32>
    %236 = vector.extract_strided_slice %223 {offsets = [0, 128], sizes = [8, 64], strides = [1, 1]} : vector<8x256xf32> to vector<8x64xf32>
    %237 = math.tanh %236 : vector<8x64xf32>
    %238 = vector.extract_strided_slice %223 {offsets = [0, 192], sizes = [8, 64], strides = [1, 1]} : vector<8x256xf32> to vector<8x64xf32>
    %239 = arith.negf %238 : vector<8x64xf32>
    %240 = math.exp %239 : vector<8x64xf32>
    %cst_44 = arith.constant 1.000000e+00 : f32
    %241 = vector.broadcast %cst_44 : f32 to vector<8x64xf32>
    %242 = arith.addf %241, %240 : vector<8x64xf32>
    %243 = arith.divf %241, %242 : vector<8x64xf32>
    %244 = arith.mulf %235, %218 : vector<8x64xf32>
    %245 = arith.mulf %229, %237 : vector<8x64xf32>
    %246 = arith.addf %244, %245 : vector<8x64xf32>
    %247 = math.tanh %246 : vector<8x64xf32>
    %248 = arith.mulf %243, %247 : vector<8x64xf32>
    %249 = vector.extract_strided_slice %50 {offsets = [56, 0], sizes = [8, 256], strides = [1, 1]} : vector<64x256xf32> to vector<8x256xf32>
    %cst_45 = arith.constant dense<0.000000e+00> : vector<8x256xf32>
    %250 = tpu.matmul %248, %45, %cst_45 {dimension_numbers = #tpu.dot_dimension_numbers<[1], [0], [0], [1], [0, 0, 1, 1], [], []>} : vector<8x64xf32>, vector<64x256xf32>, vector<8x256xf32> -> vector<8x256xf32>
    %251 = arith.addf %249, %250 : vector<8x256xf32>
    %252 = vector.extract_strided_slice %251 {offsets = [0, 0], sizes = [8, 64], strides = [1, 1]} : vector<8x256xf32> to vector<8x64xf32>
    %253 = arith.negf %252 : vector<8x64xf32>
    %254 = math.exp %253 : vector<8x64xf32>
    %cst_46 = arith.constant 1.000000e+00 : f32
    %255 = vector.broadcast %cst_46 : f32 to vector<8x64xf32>
    %256 = arith.addf %255, %254 : vector<8x64xf32>
    %257 = arith.divf %255, %256 : vector<8x64xf32>
    %258 = vector.extract_strided_slice %251 {offsets = [0, 64], sizes = [8, 64], strides = [1, 1]} : vector<8x256xf32> to vector<8x64xf32>
    %259 = arith.negf %258 : vector<8x64xf32>
    %260 = math.exp %259 : vector<8x64xf32>
    %cst_47 = arith.constant 1.000000e+00 : f32
    %261 = vector.broadcast %cst_47 : f32 to vector<8x64xf32>
    %262 = arith.addf %261, %260 : vector<8x64xf32>
    %263 = arith.divf %261, %262 : vector<8x64xf32>
    %264 = vector.extract_strided_slice %251 {offsets = [0, 128], sizes = [8, 64], strides = [1, 1]} : vector<8x256xf32> to vector<8x64xf32>
    %265 = math.tanh %264 : vector<8x64xf32>
    %266 = vector.extract_strided_slice %251 {offsets = [0, 192], sizes = [8, 64], strides = [1, 1]} : vector<8x256xf32> to vector<8x64xf32>
    %267 = arith.negf %266 : vector<8x64xf32>
    %268 = math.exp %267 : vector<8x64xf32>
    %cst_48 = arith.constant 1.000000e+00 : f32
    %269 = vector.broadcast %cst_48 : f32 to vector<8x64xf32>
    %270 = arith.addf %269, %268 : vector<8x64xf32>
    %271 = arith.divf %269, %270 : vector<8x64xf32>
    %272 = arith.mulf %263, %246 : vector<8x64xf32>
    %273 = arith.mulf %257, %265 : vector<8x64xf32>
    %274 = arith.addf %272, %273 : vector<8x64xf32>
    %275 = math.tanh %274 : vector<8x64xf32>
    %276 = arith.mulf %271, %275 : vector<8x64xf32>
    %277 = tpu.concatenate %276, %37, %44 in 1 : vector<8x64xf32>, vector<8x8xf32>, vector<8x8xf32> -> vector<8x80xf32>
    %c80 = arith.constant 80 : index
    %c0_49 = arith.constant 0 : index
    %278 = vector.load %arg4[%c80, %c0_49] : memref<416x256xf32, #tpu.memory_space<vmem>>, vector<80x64xf32>
    %cst_50 = arith.constant dense<0.000000e+00> : vector<8x64xf32>
    %279 = tpu.matmul %277, %278, %cst_50 {dimension_numbers = #tpu.dot_dimension_numbers<[1], [0], [0], [1], [0, 0, 1, 1], [], []>} : vector<8x80xf32>, vector<80x64xf32>, vector<8x64xf32> -> vector<8x64xf32>
    %c160 = arith.constant 160 : index
    %c0_51 = arith.constant 0 : index
    %280 = vector.load %arg4[%c160, %c0_51] : memref<416x256xf32, #tpu.memory_space<vmem>>, vector<1x64xf32>
    %281 = vector.broadcast %280 : vector<1x64xf32> to vector<8x64xf32>
    %282 = arith.addf %279, %281 : vector<8x64xf32>
    %cst_52 = arith.constant 0.000000e+00 : f32
    %283 = vector.broadcast %cst_52 : f32 to vector<8x64xf32>
    %284 = arith.maximumf %282, %283 : vector<8x64xf32>
    %c168 = arith.constant 168 : index
    %c0_53 = arith.constant 0 : index
    %285 = vector.load %arg4[%c168, %c0_53] : memref<416x256xf32, #tpu.memory_space<vmem>>, vector<64x64xf32>
    %cst_54 = arith.constant dense<0.000000e+00> : vector<8x64xf32>
    %286 = tpu.matmul %284, %285, %cst_54 {dimension_numbers = #tpu.dot_dimension_numbers<[1], [0], [0], [1], [0, 0, 1, 1], [], []>} : vector<8x64xf32>, vector<64x64xf32>, vector<8x64xf32> -> vector<8x64xf32>
    %c232 = arith.constant 232 : index
    %c0_55 = arith.constant 0 : index
    %287 = vector.load %arg4[%c232, %c0_55] : memref<416x256xf32, #tpu.memory_space<vmem>>, vector<1x64xf32>
    %288 = vector.broadcast %287 : vector<1x64xf32> to vector<8x64xf32>
    %289 = arith.addf %286, %288 : vector<8x64xf32>
    %cst_56 = arith.constant 0.000000e+00 : f32
    %290 = vector.broadcast %cst_56 : f32 to vector<8x64xf32>
    %291 = arith.maximumf %289, %290 : vector<8x64xf32>
    %c240 = arith.constant 240 : index
    %c0_57 = arith.constant 0 : index
    %292 = vector.load %arg4[%c240, %c0_57] : memref<416x256xf32, #tpu.memory_space<vmem>>, vector<64x2xf32>
    %cst_58 = arith.constant dense<0.000000e+00> : vector<8x2xf32>
    %293 = tpu.matmul %291, %292, %cst_58 {dimension_numbers = #tpu.dot_dimension_numbers<[1], [0], [0], [1], [0, 0, 1, 1], [], []>} : vector<8x64xf32>, vector<64x2xf32>, vector<8x2xf32> -> vector<8x2xf32>
    %c304 = arith.constant 304 : index
    %c0_59 = arith.constant 0 : index
    %294 = vector.load %arg4[%c304, %c0_59] : memref<416x256xf32, #tpu.memory_space<vmem>>, vector<1x2xf32>
    %295 = vector.broadcast %294 : vector<1x2xf32> to vector<8x2xf32>
    %296 = arith.addf %293, %295 : vector<8x2xf32>
    %297 = arith.negf %296 : vector<8x2xf32>
    %298 = math.exp %297 : vector<8x2xf32>
    %cst_60 = arith.constant 1.000000e+00 : f32
    %299 = vector.broadcast %cst_60 : f32 to vector<8x2xf32>
    %300 = arith.addf %299, %298 : vector<8x2xf32>
    %301 = arith.divf %299, %300 : vector<8x2xf32>
    %302 = vector.extract_strided_slice %301 {offsets = [0, 0], sizes = [8, 1], strides = [1, 1]} : vector<8x2xf32> to vector<8x1xf32>
    %303 = vector.extract_strided_slice %301 {offsets = [0, 1], sizes = [8, 1], strides = [1, 1]} : vector<8x2xf32> to vector<8x1xf32>
    %c0_61 = arith.constant 0 : index
    %c0_62 = arith.constant 0 : index
    %304 = vector.load %arg3[%c0_61, %c0_62] : memref<8x5xf32, #tpu.memory_space<vmem>>, vector<8x5xf32>
    %305 = vector.extract_strided_slice %304 {offsets = [0, 0], sizes = [8, 1], strides = [1, 1]} : vector<8x5xf32> to vector<8x1xf32>
    %306 = vector.extract_strided_slice %304 {offsets = [0, 1], sizes = [8, 1], strides = [1, 1]} : vector<8x5xf32> to vector<8x1xf32>
    %307 = vector.extract_strided_slice %304 {offsets = [0, 2], sizes = [8, 1], strides = [1, 1]} : vector<8x5xf32> to vector<8x1xf32>
    %308 = vector.extract_strided_slice %304 {offsets = [0, 3], sizes = [8, 1], strides = [1, 1]} : vector<8x5xf32> to vector<8x1xf32>
    %309 = vector.extract_strided_slice %304 {offsets = [0, 4], sizes = [8, 1], strides = [1, 1]} : vector<8x5xf32> to vector<8x1xf32>
    %310 = arith.addf %305, %306 : vector<8x1xf32>
    %311 = arith.addf %310, %307 : vector<8x1xf32>
    %312 = arith.addf %311, %308 : vector<8x1xf32>
    %313 = arith.addf %312, %309 : vector<8x1xf32>
    %cst_63 = arith.constant 0.000000e+00 : f32
    %314 = vector.broadcast %cst_63 : f32 to vector<8x1xf32>
    %315 = arith.cmpf oeq, %313, %314 : vector<8x1xf32>
    %cst_64 = arith.constant 1.000000e+00 : f32
    %316 = vector.broadcast %cst_64 : f32 to vector<8x1xf32>
    %317 = arith.select %315, %316, %313 : vector<8x1xi1>, vector<8x1xf32>
    %318 = arith.mulf %302, %307 : vector<8x1xf32>
    %319 = arith.mulf %303, %308 : vector<8x1xf32>
    %320 = arith.addf %318, %319 : vector<8x1xf32>
    %321 = arith.mulf %320, %305 : vector<8x1xf32>
    %322 = arith.divf %321, %317 : vector<8x1xf32>
    %323 = arith.subf %305, %322 : vector<8x1xf32>
    %324 = arith.addf %306, %322 : vector<8x1xf32>
    %cst_65 = arith.constant 2.000000e-01 : f32
    %325 = vector.broadcast %cst_65 : f32 to vector<8x1xf32>
    %326 = arith.mulf %325, %306 : vector<8x1xf32>
    %327 = arith.subf %324, %326 : vector<8x1xf32>
    %cst_66 = arith.constant 1.200000e-01 : f32
    %328 = vector.broadcast %cst_66 : f32 to vector<8x1xf32>
    %329 = arith.mulf %328, %306 : vector<8x1xf32>
    %330 = arith.addf %307, %329 : vector<8x1xf32>
    %cst_67 = arith.constant 0.142857149 : f32
    %331 = vector.broadcast %cst_67 : f32 to vector<8x1xf32>
    %332 = arith.mulf %331, %307 : vector<8x1xf32>
    %333 = arith.subf %330, %332 : vector<8x1xf32>
    %cst_68 = arith.constant 8.000000e-02 : f32
    %334 = vector.broadcast %cst_68 : f32 to vector<8x1xf32>
    %335 = arith.mulf %334, %306 : vector<8x1xf32>
    %336 = arith.addf %308, %335 : vector<8x1xf32>
    %cst_69 = arith.constant 1.000000e-01 : f32
    %337 = vector.broadcast %cst_69 : f32 to vector<8x1xf32>
    %338 = arith.mulf %337, %308 : vector<8x1xf32>
    %339 = arith.subf %336, %338 : vector<8x1xf32>
    %cst_70 = arith.constant 0.142857149 : f32
    %340 = vector.broadcast %cst_70 : f32 to vector<8x1xf32>
    %341 = arith.mulf %340, %307 : vector<8x1xf32>
    %342 = arith.addf %309, %341 : vector<8x1xf32>
    %cst_71 = arith.constant 1.000000e-01 : f32
    %343 = vector.broadcast %cst_71 : f32 to vector<8x1xf32>
    %344 = arith.mulf %343, %308 : vector<8x1xf32>
    %345 = arith.addf %342, %344 : vector<8x1xf32>
    %cst_72 = arith.constant 0.000000e+00 : f32
    %346 = vector.broadcast %cst_72 : f32 to vector<8x1xf32>
    %347 = tpu.concatenate %323, %327, %333, %339, %345, %302, %303, %346 in 1 : vector<8x1xf32>, vector<8x1xf32>, vector<8x1xf32>, vector<8x1xf32>, vector<8x1xf32>, vector<8x1xf32>, vector<8x1xf32>, vector<8x1xf32> -> vector<8x8xf32>
    %c0_73 = arith.constant 0 : index
    %c0_74 = arith.constant 0 : index
    %348 = vector.load %arg5[%c0_73, %c0_74] : memref<8x8xf32, #tpu.memory_space<vmem>>, vector<8x8xf32>
    tpu.vector_store %arg5[%c0_73, %c0_74], %347 {strides = array<i32>} : memref<8x8xf32, #tpu.memory_space<vmem>>, vector<8x8xf32>,
    return
  }
  func.func @transform_0(%arg0: i32) -> (i32, i32) {
    %c0_i32 = arith.constant 0 : i32
    %c0_i32_0 = arith.constant 0 : i32
    %c0_i32_1 = arith.constant 0 : i32
    return %c0_i32, %c0_i32_0 : i32, i32
  }
  func.func @transform_1(%arg0: i32) -> (i32, i32) {
    %c0_i32 = arith.constant 0 : i32
    %c0_i32_0 = arith.constant 0 : i32
    %c0_i32_1 = arith.constant 0 : i32
    return %c0_i32, %c0_i32_0 : i32, i32
  }
  func.func @transform_2(%arg0: i32) -> (i32, i32) {
    %c0_i32 = arith.constant 0 : i32
    %c0_i32_0 = arith.constant 0 : i32
    %c0_i32_1 = arith.constant 0 : i32
    return %c0_i32, %c0_i32_0 : i32, i32
  }
  func.func @transform_3(%arg0: i32) -> (i32, i32) {
    %c0_i32 = arith.constant 0 : i32
    %c0_i32_0 = arith.constant 0 : i32
    %c0_i32_1 = arith.constant 0 : i32
    return %c0_i32, %c0_i32_0 : i32, i32
  }
  func.func @transform_4(%arg0: i32) -> (i32, i32) {
    %c0_i32 = arith.constant 0 : i32
    %c0_i32_0 = arith.constant 0 : i32
    %c0_i32_1 = arith.constant 0 : i32
    return %c0_i32, %c0_i32_0 : i32, i32
  }
}

</mosaic_0001>

<llo_original>
// kernel: deep_hfmd_forward.1
$region0: #{deep_hfmd_forward.1}
  #allocation0 [shape = 'u32[]', space=smem, size = 0x4, offset = 0x4, fixed_abs, tag = 'smem constant byte address 0x4 - core index']
  #allocation1 [shape = 'u32[72,128]{1,0:T(1,128)}', space=vmem, size = 0x9000, scoped, tag = 'internal scratch']
  %s0 = inlined_call_operand.vmem [shape: f32[64,6], index: 0, kind: input, shape index: {}]
  %s1 = inlined_call_operand.vmem [shape: f32[8,5], index: 1, kind: input, shape index: {}]
  %s2 = inlined_call_operand.vmem [shape: f32[8,5], index: 2, kind: input, shape index: {}]
  %s3 = inlined_call_operand.hbm [shape: f32[416,256], index: 3, kind: input, shape index: {}]
  %s4 = inlined_call_operand.vmem [shape: f32[8,8], index: 4, kind: output, shape index: {}]
  %s5 = sld [smem:[#allocation0]]
  $region30: #{deep_hfmd_forward.1} parent=0
    _
  %s7 = ssub.s32 1, %s5
  %s8 = scalar_select 0, %s7, %s5
  $region1: #{deep_hfmd_forward.1} parent=0
    #allocation2 [shape = 'u8[425984]{0}', space=vmem, size = 0x68000, scoped, tag = 'input window, operand 3, single buffered']
    #allocation3 [shape = 's32[1]{0}', space=sflag, size = 0x4, scoped, tag = 'scoped memory for deep_hfmd_forward.1']
    %9 = vsyncpa [#allocation3], 0
    // Predicated region
    $region2: #{deep_hfmd_forward.1} parent=1 // pred_check
      _
    $region3: #{deep_hfmd_forward.1} parent=1 // pred_check_branch
      %11 = sbr.rel (0) target = $region5
    $region4: #{deep_hfmd_forward.1} parent=1 // pred_region
      _
    $region5: #{deep_hfmd_forward.1} parent=1 // pred_fallthru
      _
    // Predicated region
    $region6: #{deep_hfmd_forward.1} parent=1 // pred_check
      _
    $region7: #{deep_hfmd_forward.1} parent=1 // pred_check_branch
      %13 = sbr.rel (0) target = $region9
    $region8: #{deep_hfmd_forward.1} parent=1 // pred_region
      _
    $region9: #{deep_hfmd_forward.1} parent=1 // pred_fallthru
      _
    // Predicated region
    $region10: #{deep_hfmd_forward.1} parent=1 // pred_check
      _
    $region11: #{deep_hfmd_forward.1} parent=1 // pred_check_branch
      %15 = sbr.rel (0) target = $region13
    $region12: #{deep_hfmd_forward.1} parent=1 // pred_region
      _
    $region13: #{deep_hfmd_forward.1} parent=1 // pred_fallthru
      _
    // Predicated region
    $region14: #{deep_hfmd_forward.1} parent=1 // pred_check
      _
    $region15: #{deep_hfmd_forward.1} parent=1 // pred_check_branch
      %17 = sbr.rel (0) target = $region17
    $region16: #{deep_hfmd_forward.1} parent=1 // pred_region
      %19 = vsyncadd [#allocation3], 0
      %s20 = sshll.u32 %s3, 4
      %s21 = int_to_ptr.hbm [resolvable:$true] %s20
      %s22 = sshll.u32 [#allocation2], 4
      %s23 = int_to_ptr.vmem [resolvable:$true] %s22
      %28 = dma.hbm_to_vmem [thread:$0]  %s21, 13312, %s23, [#allocation3], 256, 256, 16
    $region17: #{deep_hfmd_forward.1} parent=1 // pred_fallthru
      _
    // Predicated region
    $region18: #{deep_hfmd_forward.1} parent=1 // pred_check
      _
    $region19: #{deep_hfmd_forward.1} parent=1 // pred_check_branch
      %30 = sbr.rel (0) target = $region21
    $region20: #{deep_hfmd_forward.1} parent=1 // pred_region
      %32 = dma.done [#allocation3], 13312
    $region21: #{deep_hfmd_forward.1} parent=1 // pred_fallthru
      _
    %v33 = vld [vmem:[%s0] sm:$0xff]
    %v34 = vld [vmem:[%s0 + $0x8] sm:$0xff]
    %v35 = vld [vmem:[%s0 + $0x10] sm:$0xff]
    %v36 = vld [vmem:[%s0 + $0x18] sm:$0xff]
    %v37 = vld [vmem:[%s0 + $0x20] sm:$0xff]
    %v38 = vld [vmem:[%s0 + $0x28] sm:$0xff]
    %v39 = vld [vmem:[%s0 + $0x30] sm:$0xff]
    %v40 = vld [vmem:[%s0 + $0x38] sm:$0xff]
    %v41 = vld [vmem:[#allocation2 + $0x270] sm:$0xff]
    %v42 = vld [vmem:[#allocation2 + $0x280] sm:$0xff]
    %v43 = vld [vmem:[#allocation2 + $0x290] sm:$0xff]
    %v44 = vld [vmem:[#allocation2 + $0x2a0] sm:$0xff]
    %v45 = vld [vmem:[#allocation2 + $0x2b0] sm:$0xff]
    %v46 = vld [vmem:[#allocation2 + $0x2c0] sm:$0xff]
    %v47 = vld [vmem:[#allocation2 + $0x2d0] sm:$0xff]
    %v48 = vld [vmem:[#allocation2 + $0x2e0] sm:$0xff]
    %v49 = vmul.f32 %v33, %v41
    %v50 = vmul.f32 %v34, %v42
    %v51 = vmul.f32 %v35, %v43
    %v52 = vmul.f32 %v36, %v44
    %v53 = vmul.f32 %v37, %v45
    %v54 = vmul.f32 %v38, %v46
    %v55 = vmul.f32 %v39, %v47
    %v56 = vmul.f32 %v40, %v48
    %v57 = vadd.f32 %v49, %v50
    %v58 = vadd.f32 %v57, %v51
    %v59 = vadd.f32 %v58, %v52
    %v60 = vadd.f32 %v59, %v53
    %v61 = vadd.f32 %v60, %v54
    %v62 = vadd.f32 %v61, %v55
    %v63 = vadd.f32 %v62, %v56
    %v64 = vtanh.pop %v63
    %v65 = vld [vmem:[%s1] sm:$0xff]
    %v66 = vld [vmem:[#allocation2 + $0x2f0] sm:$0x1f]
    %v67 = vld [vmem:[#allocation2 + $0x300] ss:$0 sm:$0xff]
    %vm68 = vcmask 39936
    %v70 = vsel %vm68, %v65, 0
    %vm72 = vcmask 1044480
    %v74 = vsel %vm72, %v66, 0
    %76 = vmatpush.msra.mxu0 0.0
    %77 = vmatpush.msra.mxu0 0.0
    %78 = vmatpush.msra.mxu0 0.0
    %79 = vmatpush.msra.mxu0 0.0
    %80 = vmatpush.msra.mxu0 0.0
    %81 = vmatpush.msra.mxu0 0.0
    %82 = vmatpush.msra.mxu0 0.0
    %83 = vmatpush.msra.mxu0 0.0
    %84 = vmatpush.msra.mxu0 0.0
    %85 = vmatpush.msra.mxu0 0.0
    %86 = vmatpush.msra.mxu0 0.0
    %87 = vmatpush.msra.mxu0 0.0
    %88 = vmatpush.msra.mxu0 0.0
    %89 = vmatpush.msra.mxu0 0.0
    %90 = vmatpush.msra.mxu0 0.0
    %91 = vmatpush.msra.mxu0 %v74
    %92 = vmatmul.f32.gmra.mxu0 %v70
    %v93 = vpop.f32.mrf.mxu0
    %v94 = vadd.f32 %v67, %v93
    %95 = vdwg.mxu0
    %v96 = vtanh.pop %v94
    %v97 = vmul.f32 %v64, %v64
    %v98 = vmul.f32 %v96, %v96
    %100 = vrot.lane.b32.xlu0 %v97, 6
    %v101 = vpop.permute.xlu0 %100
    %104 = vrot.lane.b32.xlu0 %v96, 12
    %v105 = vpop.permute.xlu0 %104
    %108 = vrot.lane.b32.xlu0 %v98, 17
    %v109 = vpop.permute.xlu0 %108
    %vm111 = vcmask 48128
    %v112 = vsel %vm111, %v64, %v101
    %vm113 = vcmask 97280
    %v114 = vsel %vm113, %v112, %v105
    %vm115 = vcmask 138240
    %v116 = vsel %vm115, %v114, %v109
    %v117 = vld [vmem:[#allocation2 + $0x310] sm:$0xff]
    %v118 = vld [vmem:[#allocation2 + $0x320] sm:$0xff]
    %v119 = vld [vmem:[#allocation2 + $0x330] sm:$0x3f]
    %vm120 = vcmask 179200
    %v122 = vsel %vm120, %v116, 0
    %vm124 = vcmask 1045504
    %v126 = vsel %vm124, %v119, 0
    %128 = vmatpush.msra.mxu0 0.0
    %129 = vmatpush.msra.mxu0 0.0
    %130 = vmatpush.msra.mxu0 0.0
    %131 = vmatpush.msra.mxu0 0.0
    %132 = vmatpush.msra.mxu0 0.0
    %133 = vmatpush.msra.mxu0 0.0
    %134 = vmatpush.msra.mxu0 0.0
    %135 = vmatpush.msra.mxu0 0.0
    %136 = vmatpush.msra.mxu0 0.0
    %137 = vmatpush.msra.mxu0 0.0
    %138 = vmatpush.msra.mxu0 0.0
    %139 = vmatpush.msra.mxu0 0.0
    %140 = vmatpush.msra.mxu0 0.0
    %141 = vmatpush.msra.mxu0 %v126
    %142 = vmatpush.msra.mxu0 %v118
    %143 = vmatpush.msra.mxu0 %v117
    %144 = vmatmul.f32.gmra.mxu0 %v122
    %v145 = vpop.f32.mrf.mxu0
    %v146 = vadd.f32 0.0, %v145
    %147 = vdwg.mxu0
    %v148 = vmul.f32 %v146, %v146
    %150 = vrot.lane.b32.xlu0 %v146, 120
    %v151 = vpop.permute.xlu0 %150
    %v153 = vsub.f32 %v148, %v151
    %v154 = vmul.f32 %v153, 0.5
    %v155 = vld [vmem:[#allocation2 + $0x10] sm:$0xff]
    %v156 = vld [vmem:[#allocation2 + $0x18] sm:$0xff]
    %v157 = vld [vmem:[#allocation2 + $0x20] sm:$0xff]
    %v158 = vld [vmem:[#allocation2 + $0x28] sm:$0xff]
    %v159 = vld [vmem:[#allocation2 + $0x30] sm:$0xff]
    %v160 = vld [vmem:[#allocation2 + $0x38] sm:$0xff]
    %v161 = vld [vmem:[#allocation2 + $0x40] sm:$0xff]
    %v162 = vld [vmem:[#allocation2 + $0x48] sm:$0xff]
    %v163 = vld [vmem:[#allocation2 + $0x50] sm:$0xff]
    %v164 = vld [vmem:[#allocation2 + $0x58] sm:$0xff]
    %v165 = vld [vmem:[#allocation2 + $0x60] sm:$0xff]
    %v166 = vld [vmem:[#allocation2 + $0x68] sm:$0xff]
    %v167 = vld [vmem:[#allocation2 + $0x70] sm:$0xff]
    %v168 = vld [vmem:[#allocation2 + $0x78] sm:$0xff]
    %v169 = vld [vmem:[#allocation2 + $0x80] sm:$0xff]
    %v170 = vld [vmem:[#allocation2 + $0x88] sm:$0xff]
    %v171 = vld [vmem:[#allocation2] sm:$0x3f]
    %v172 = vld [vmem:[#allocation2 + $0x8] sm:$0x3f]
    %s173 = scalar_lea.vmem [#allocation2], 144
    %v174 = vld [vmem:[%s173] ss:$8 sm:$0x3]
    %v176 = vperm.slane %v174, 0
    %v177 = vperm.slane %v174, 1
    %v181 = vsel %vm111, %v33, 0
    %v184 = vsel %vm111, %v34, 0
    %v187 = vsel %vm111, %v35, 0
    %v190 = vsel %vm111, %v36, 0
    %v193 = vsel %vm111, %v37, 0
    %v196 = vsel %vm111, %v38, 0
    %v199 = vsel %vm111, %v39, 0
    %v202 = vsel %vm111, %v40, 0
    %v205 = vsel %vm124, %v171, 0
    %v208 = vsel %vm124, %v172, 0
    %210 = vmatpush.msra.mxu0 0.0
    %211 = vmatpush.msra.mxu0 0.0
    %212 = vmatpush.msra.mxu0 0.0
    %213 = vmatpush.msra.mxu0 0.0
    %214 = vmatpush.msra.mxu0 0.0
    %215 = vmatpush.msra.mxu0 0.0
    %216 = vmatpush.msra.mxu0 0.0
    %217 = vmatpush.msra.mxu0 0.0
    %218 = vmatpush.msra.mxu0 0.0
    %219 = vmatpush.msra.mxu0 0.0
    %220 = vmatpush.msra.mxu0 0.0
    %221 = vmatpush.msra.mxu0 0.0
    %222 = vmatpush.msra.mxu0 0.0
    %223 = vmatpush.msra.mxu0 0.0
    %224 = vmatpush.msra.mxu0 0.0
    %225 = vmatpush.msra.mxu0 %v205
    %226 = vmatmul.f32.gmra.mxu0 %v181
    %v227 = vpop.f32.mrf.mxu0
    %v228 = vadd.f32 %v176, %v227
    %229 = vmatmul.f32.gmra.mxu0 %v184
    %v230 = vpop.f32.mrf.mxu0
    %v231 = vadd.f32 %v176, %v230
    %232 = vmatmul.f32.gmra.mxu0 %v187
    %v233 = vpop.f32.mrf.mxu0
    %v234 = vadd.f32 %v176, %v233
    %235 = vmatmul.f32.gmra.mxu0 %v190
    %v236 = vpop.f32.mrf.mxu0
    %v237 = vadd.f32 %v176, %v236
    %238 = vmatmul.f32.gmra.mxu0 %v193
    %v239 = vpop.f32.mrf.mxu0
    %v240 = vadd.f32 %v176, %v239
    %241 = vmatmul.f32.gmra.mxu0 %v196
    %v242 = vpop.f32.mrf.mxu0
    %v243 = vadd.f32 %v176, %v242
    %244 = vmatmul.f32.gmra.mxu0 %v199
    %v245 = vpop.f32.mrf.mxu0
    %v246 = vadd.f32 %v176, %v245
    %247 = vmatmul.f32.gmra.mxu0 %v202
    %v248 = vpop.f32.mrf.mxu0
    %v249 = vadd.f32 %v176, %v248
    %250 = vdwg.mxu0
    %251 = vmatpush.msra.mxu0 0.0
    %252 = vmatpush.msra.mxu0 0.0
    %253 = vmatpush.msra.mxu0 0.0
    %254 = vmatpush.msra.mxu0 0.0
    %255 = vmatpush.msra.mxu0 0.0
    %256 = vmatpush.msra.mxu0 0.0
    %257 = vmatpush.msra.mxu0 0.0
    %258 = vmatpush.msra.mxu0 0.0
    %259 = vmatpush.msra.mxu0 0.0
    %260 = vmatpush.msra.mxu0 0.0
    %261 = vmatpush.msra.mxu0 0.0
    %262 = vmatpush.msra.mxu0 0.0
    %263 = vmatpush.msra.mxu0 0.0
    %264 = vmatpush.msra.mxu0 0.0
    %265 = vmatpush.msra.mxu0 0.0
    %266 = vmatpush.msra.mxu0 %v208
    %267 = vmatmul.f32.gmra.mxu0 %v181
    %v268 = vpop.f32.mrf.mxu0
    %v269 = vadd.f32 %v177, %v268
    %270 = vmatmul.f32.gmra.mxu0 %v184
    %v271 = vpop.f32.mrf.mxu0
    %v272 = vadd.f32 %v177, %v271
    %273 = vmatmul.f32.gmra.mxu0 %v187
    %v274 = vpop.f32.mrf.mxu0
    %v275 = vadd.f32 %v177, %v274
    %276 = vmatmul.f32.gmra.mxu0 %v190
    %v277 = vpop.f32.mrf.mxu0
    %v278 = vadd.f32 %v177, %v277
    %279 = vmatmul.f32.gmra.mxu0 %v193
    %v280 = vpop.f32.mrf.mxu0
    %v281 = vadd.f32 %v177, %v280
    %282 = vmatmul.f32.gmra.mxu0 %v196
    %v283 = vpop.f32.mrf.mxu0
    %v284 = vadd.f32 %v177, %v283
    %285 = vmatmul.f32.gmra.mxu0 %v199
    %v286 = vpop.f32.mrf.mxu0
    %v287 = vadd.f32 %v177, %v286
    %288 = vmatmul.f32.gmra.mxu0 %v202
    %v289 = vpop.f32.mrf.mxu0
    %v290 = vadd.f32 %v177, %v289
    %291 = vdwg.mxu0
    %vm292 = vcmask 523264
    %v294 = vsel %vm292, 0.0, 0
    %296 = vmatpush.msra.mxu0 0.0
    %297 = vmatpush.msra.mxu0 0.0
    %298 = vmatpush.msra.mxu0 0.0
    %299 = vmatpush.msra.mxu0 0.0
    %300 = vmatpush.msra.mxu0 0.0
    %301 = vmatpush.msra.mxu0 0.0
    %302 = vmatpush.msra.mxu0 0.0
    %303 = vmatpush.msra.mxu0 0.0
    %304 = vmatpush.msra.mxu0 %v169
    %305 = vmatpush.msra.mxu0 %v167
    %306 = vmatpush.msra.mxu0 %v165
    %307 = vmatpush.msra.mxu0 %v163
    %308 = vmatpush.msra.mxu0 %v161
    %309 = vmatpush.msra.mxu0 %v159
    %310 = vmatpush.msra.mxu0 %v157
    %311 = vmatpush.msra.mxu0 %v155
    %312 = vmatmul.f32.gmra.mxu0 %v294
    %v313 = vpop.f32.mrf.mxu0
    %v314 = vadd.f32 0.0, %v313
    %315 = vdwg.mxu0
    %316 = vmatpush.msra.mxu0 0.0
    %317 = vmatpush.msra.mxu0 0.0
    %318 = vmatpush.msra.mxu0 0.0
    %319 = vmatpush.msra.mxu0 0.0
    %320 = vmatpush.msra.mxu0 0.0
    %321 = vmatpush.msra.mxu0 0.0
    %322 = vmatpush.msra.mxu0 0.0
    %323 = vmatpush.msra.mxu0 0.0
    %324 = vmatpush.msra.mxu0 %v170
    %325 = vmatpush.msra.mxu0 %v168
    %326 = vmatpush.msra.mxu0 %v166
    %327 = vmatpush.msra.mxu0 %v164
    %328 = vmatpush.msra.mxu0 %v162
    %329 = vmatpush.msra.mxu0 %v160
    %330 = vmatpush.msra.mxu0 %v158
    %331 = vmatpush.msra.mxu0 %v156
    %332 = vmatmul.f32.gmra.mxu0 %v294
    %v333 = vpop.f32.mrf.mxu0
    %v334 = vadd.f32 0.0, %v333
    %335 = vdwg.mxu0
    %v336 = vadd.f32 %v228, %v314
    %v337 = vadd.f32 %v269, %v334
    %v338 = vxor.u32 %v336, 2147483648
    %v339 = vmul.f32 %v338, 1.442695
    %v340 = vpow.pop %v339
    %v341 = vadd.f32 %v340, 1.0
    %v342 = vrcp.pop %v341
    %v343 = vmul.f32 %v341, %v342
    %v344 = vsub.f32 1.0, %v343
    %v345 = vmul.f32 %v342, %v344
    %v346 = vadd.f32 %v342, %v345
    %vm347 = vweird.f32 %v341
    %vm348 = vweird.f32 %v342
    %vm349 = vmor %vm347, %vm348
    %v350 = vsel %vm349, %v342, %v346
    %v351 = vand.u32 2147483647, %v341
    %vm352 = vcmp.eq.f32.partialorder %v351, 8.507059e+37
    %v353 = vand.u32 %v341, 2147483648
    %v354 = vor.u32 1.1754944e-38, %v353
    %v355 = vsel %vm352, %v354, %v350
    %v356 = vmul.f32 1.0, %v355
    %v357 = vtanh.pop %v337
    %v358 = vxor.u32 %v337, 2147483648
    %v359 = vmul.f32 %v358, 1.442695
    %v360 = vpow.pop %v359
    %v361 = vadd.f32 %v360, 1.0
    %v362 = vrcp.pop %v361
    %v363 = vmul.f32 %v361, %v362
    %v364 = vsub.f32 1.0, %v363
    %v365 = vmul.f32 %v362, %v364
    %v366 = vadd.f32 %v362, %v365
    %vm367 = vweird.f32 %v361
    %vm368 = vweird.f32 %v362
    %vm369 = vmor %vm367, %vm368
    %v370 = vsel %vm369, %v362, %v366
    %v371 = vand.u32 2147483647, %v361
    %vm372 = vcmp.eq.f32.partialorder %v371, 8.507059e+37
    %v373 = vand.u32 %v361, 2147483648
    %v374 = vor.u32 1.1754944e-38, %v373
    %v375 = vsel %vm372, %v374, %v370
    %v376 = vmul.f32 1.0, %v375
    %v377 = vmul.f32 %v356, 0.0
    %v378 = vmul.f32 %v356, %v357
    %380 = vrot.lane.b32.xlu0 %v378, 64
    %v381 = vpop.permute.xlu0 %380
    %v383 = vadd.f32 %v377, %v381
    %v384 = vtanh.pop %v383
    %v385 = vmul.f32 %v376, %v384
    %387 = vrot.lane.b32.xlu0 %v385, 64
    %v388 = vpop.permute.xlu0 %387
    %v389 = vsel %vm292, %v388, 0
    %391 = vmatpush.msra.mxu0 0.0
    %392 = vmatpush.msra.mxu0 0.0
    %393 = vmatpush.msra.mxu0 0.0
    %394 = vmatpush.msra.mxu0 0.0
    %395 = vmatpush.msra.mxu0 0.0
    %396 = vmatpush.msra.mxu0 0.0
    %397 = vmatpush.msra.mxu0 0.0
    %398 = vmatpush.msra.mxu0 0.0
    %399 = vmatpush.msra.mxu0 %v169
    %400 = vmatpush.msra.mxu0 %v167
    %401 = vmatpush.msra.mxu0 %v165
    %402 = vmatpush.msra.mxu0 %v163
    %403 = vmatpush.msra.mxu0 %v161
    %404 = vmatpush.msra.mxu0 %v159
    %405 = vmatpush.msra.mxu0 %v157
    %406 = vmatpush.msra.mxu0 %v155
    %407 = vmatmul.f32.gmra.mxu0 %v389
    %v408 = vpop.f32.mrf.mxu0
    %v409 = vadd.f32 0.0, %v408
    %410 = vdwg.mxu0
    %411 = vmatpush.msra.mxu0 0.0
    %412 = vmatpush.msra.mxu0 0.0
    %413 = vmatpush.msra.mxu0 0.0
    %414 = vmatpush.msra.mxu0 0.0
    %415 = vmatpush.msra.mxu0 0.0
    %416 = vmatpush.msra.mxu0 0.0
    %417 = vmatpush.msra.mxu0 0.0
    %418 = vmatpush.msra.mxu0 0.0
    %419 = vmatpush.msra.mxu0 %v170
    %420 = vmatpush.msra.mxu0 %v168
    %421 = vmatpush.msra.mxu0 %v166
    %422 = vmatpush.msra.mxu0 %v164
    %423 = vmatpush.msra.mxu0 %v162
    %424 = vmatpush.msra.mxu0 %v160
    %425 = vmatpush.msra.mxu0 %v158
    %426 = vmatpush.msra.mxu0 %v156
    %427 = vmatmul.f32.gmra.mxu0 %v389
    %v428 = vpop.f32.mrf.mxu0
    %v429 = vadd.f32 0.0, %v428
    %430 = vdwg.mxu0
    %v431 = vadd.f32 %v231, %v409
    %v432 = vadd.f32 %v272, %v429
    %v433 = vxor.u32 %v431, 2147483648
    %v434 = vmul.f32 %v433, 1.442695
    %v435 = vpow.pop %v434
    %v436 = vadd.f32 %v435, 1.0
    %v437 = vrcp.pop %v436
    %v438 = vmul.f32 %v436, %v437
    %v439 = vsub.f32 1.0, %v438
    %v440 = vmul.f32 %v437, %v439
    %v441 = vadd.f32 %v437, %v440
    %vm442 = vweird.f32 %v436
    %vm443 = vweird.f32 %v437
    %vm444 = vmor %vm442, %vm443
    %v445 = vsel %vm444, %v437, %v441
    %v446 = vand.u32 2147483647, %v436
    %vm447 = vcmp.eq.f32.partialorder %v446, 8.507059e+37
    %v448 = vand.u32 %v436, 2147483648
    %v449 = vor.u32 1.1754944e-38, %v448
    %v450 = vsel %vm447, %v449, %v445
    %v451 = vmul.f32 1.0, %v450
    %v452 = vtanh.pop %v432
    %v453 = vxor.u32 %v432, 2147483648
    %v454 = vmul.f32 %v453, 1.442695
    %v455 = vpow.pop %v454
    %v456 = vadd.f32 %v455, 1.0
    %v457 = vrcp.pop %v456
    %v458 = vmul.f32 %v456, %v457
    %v459 = vsub.f32 1.0, %v458
    %v460 = vmul.f32 %v457, %v459
    %v461 = vadd.f32 %v457, %v460
    %vm462 = vweird.f32 %v456
    %vm463 = vweird.f32 %v457
    %vm464 = vmor %vm462, %vm463
    %v465 = vsel %vm464, %v457, %v461
    %v466 = vand.u32 2147483647, %v456
    %vm467 = vcmp.eq.f32.partialorder %v466, 8.507059e+37
    %v468 = vand.u32 %v456, 2147483648
    %v469 = vor.u32 1.1754944e-38, %v468
    %v470 = vsel %vm467, %v469, %v465
    %v471 = vmul.f32 1.0, %v470
    %v472 = vmul.f32 %v451, %v383
    %v473 = vmul.f32 %v451, %v452
    %475 = vrot.lane.b32.xlu0 %v473, 64
    %v476 = vpop.permute.xlu0 %475
    %v478 = vadd.f32 %v472, %v476
    %v479 = vtanh.pop %v478
    %v480 = vmul.f32 %v471, %v479
    %482 = vrot.lane.b32.xlu0 %v480, 64
    %v483 = vpop.permute.xlu0 %482
    %v484 = vsel %vm292, %v483, 0
    %486 = vmatpush.msra.mxu0 0.0
    %487 = vmatpush.msra.mxu0 0.0
    %488 = vmatpush.msra.mxu0 0.0
    %489 = vmatpush.msra.mxu0 0.0
    %490 = vmatpush.msra.mxu0 0.0
    %491 = vmatpush.msra.mxu0 0.0
    %492 = vmatpush.msra.mxu0 0.0
    %493 = vmatpush.msra.mxu0 0.0
    %494 = vmatpush.msra.mxu0 %v169
    %495 = vmatpush.msra.mxu0 %v167
    %496 = vmatpush.msra.mxu0 %v165
    %497 = vmatpush.msra.mxu0 %v163
    %498 = vmatpush.msra.mxu0 %v161
    %499 = vmatpush.msra.mxu0 %v159
    %500 = vmatpush.msra.mxu0 %v157
    %501 = vmatpush.msra.mxu0 %v155
    %502 = vmatmul.f32.gmra.mxu0 %v484
    %v503 = vpop.f32.mrf.mxu0
    %v504 = vadd.f32 0.0, %v503
    %505 = vdwg.mxu0
    %506 = vmatpush.msra.mxu0 0.0
    %507 = vmatpush.msra.mxu0 0.0
    %508 = vmatpush.msra.mxu0 0.0
    %509 = vmatpush.msra.mxu0 0.0
    %510 = vmatpush.msra.mxu0 0.0
    %511 = vmatpush.msra.mxu0 0.0
    %512 = vmatpush.msra.mxu0 0.0
    %513 = vmatpush.msra.mxu0 0.0
    %514 = vmatpush.msra.mxu0 %v170
    %515 = vmatpush.msra.mxu0 %v168
    %516 = vmatpush.msra.mxu0 %v166
    %517 = vmatpush.msra.mxu0 %v164
    %518 = vmatpush.msra.mxu0 %v162
    %519 = vmatpush.msra.mxu0 %v160
    %520 = vmatpush.msra.mxu0 %v158
    %521 = vmatpush.msra.mxu0 %v156
    %522 = vmatmul.f32.gmra.mxu0 %v484
    %v523 = vpop.f32.mrf.mxu0
    %v524 = vadd.f32 0.0, %v523
    %525 = vdwg.mxu0
    %v526 = vadd.f32 %v234, %v504
    %v527 = vadd.f32 %v275, %v524
    %v528 = vxor.u32 %v526, 2147483648
    %v529 = vmul.f32 %v528, 1.442695
    %v530 = vpow.pop %v529
    %v531 = vadd.f32 %v530, 1.0
    %v532 = vrcp.pop %v531
    %v533 = vmul.f32 %v531, %v532
    %v534 = vsub.f32 1.0, %v533
    %v535 = vmul.f32 %v532, %v534
    %v536 = vadd.f32 %v532, %v535
    %vm537 = vweird.f32 %v531
    %vm538 = vweird.f32 %v532
    %vm539 = vmor %vm537, %vm538
    %v540 = vsel %vm539, %v532, %v536
    %v541 = vand.u32 2147483647, %v531
    %vm542 = vcmp.eq.f32.partialorder %v541, 8.507059e+37
    %v543 = vand.u32 %v531, 2147483648
    %v544 = vor.u32 1.1754944e-38, %v543
    %v545 = vsel %vm542, %v544, %v540
    %v546 = vmul.f32 1.0, %v545
    %v547 = vtanh.pop %v527
    %v548 = vxor.u32 %v527, 2147483648
    %v549 = vmul.f32 %v548, 1.442695
    %v550 = vpow.pop %v549
    %v551 = vadd.f32 %v550, 1.0
    %v552 = vrcp.pop %v551
    %v553 = vmul.f32 %v551, %v552
    %v554 = vsub.f32 1.0, %v553
    %v555 = vmul.f32 %v552, %v554
    %v556 = vadd.f32 %v552, %v555
    %vm557 = vweird.f32 %v551
    %vm558 = vweird.f32 %v552
    %vm559 = vmor %vm557, %vm558
    %v560 = vsel %vm559, %v552, %v556
    %v561 = vand.u32 2147483647, %v551
    %vm562 = vcmp.eq.f32.partialorder %v561, 8.507059e+37
    %v563 = vand.u32 %v551, 2147483648
    %v564 = vor.u32 1.1754944e-38, %v563
    %v565 = vsel %vm562, %v564, %v560
    %v566 = vmul.f32 1.0, %v565
    %v567 = vmul.f32 %v546, %v478
    %v568 = vmul.f32 %v546, %v547
    %570 = vrot.lane.b32.xlu0 %v568, 64
    %v571 = vpop.permute.xlu0 %570
    %v573 = vadd.f32 %v567, %v571
    %v574 = vtanh.pop %v573
    %v575 = vmul.f32 %v566, %v574
    %577 = vrot.lane.b32.xlu0 %v575, 64
    %v578 = vpop.permute.xlu0 %577
    %v579 = vsel %vm292, %v578, 0
    %581 = vmatpush.msra.mxu0 0.0
    %582 = vmatpush.msra.mxu0 0.0
    %583 = vmatpush.msra.mxu0 0.0
    %584 = vmatpush.msra.mxu0 0.0
    %585 = vmatpush.msra.mxu0 0.0
    %586 = vmatpush.msra.mxu0 0.0
    %587 = vmatpush.msra.mxu0 0.0
    %588 = vmatpush.msra.mxu0 0.0
    %589 = vmatpush.msra.mxu0 %v169
    %590 = vmatpush.msra.mxu0 %v167
    %591 = vmatpush.msra.mxu0 %v165
    %592 = vmatpush.msra.mxu0 %v163
    %593 = vmatpush.msra.mxu0 %v161
    %594 = vmatpush.msra.mxu0 %v159
    %595 = vmatpush.msra.mxu0 %v157
    %596 = vmatpush.msra.mxu0 %v155
    %597 = vmatmul.f32.gmra.mxu0 %v579
    %v598 = vpop.f32.mrf.mxu0
    %v599 = vadd.f32 0.0, %v598
    %600 = vdwg.mxu0
    %601 = vmatpush.msra.mxu0 0.0
    %602 = vmatpush.msra.mxu0 0.0
    %603 = vmatpush.msra.mxu0 0.0
    %604 = vmatpush.msra.mxu0 0.0
    %605 = vmatpush.msra.mxu0 0.0
    %606 = vmatpush.msra.mxu0 0.0
    %607 = vmatpush.msra.mxu0 0.0
    %608 = vmatpush.msra.mxu0 0.0
    %609 = vmatpush.msra.mxu0 %v170
    %610 = vmatpush.msra.mxu0 %v168
    %611 = vmatpush.msra.mxu0 %v166
    %612 = vmatpush.msra.mxu0 %v164
    %613 = vmatpush.msra.mxu0 %v162
    %614 = vmatpush.msra.mxu0 %v160
    %615 = vmatpush.msra.mxu0 %v158
    %616 = vmatpush.msra.mxu0 %v156
    %617 = vmatmul.f32.gmra.mxu0 %v579
    %v618 = vpop.f32.mrf.mxu0
    %v619 = vadd.f32 0.0, %v618
    %620 = vdwg.mxu0
    %v621 = vadd.f32 %v237, %v599
    %v622 = vadd.f32 %v278, %v619
    %v623 = vxor.u32 %v621, 2147483648
    %v624 = vmul.f32 %v623, 1.442695
    %v625 = vpow.pop %v624
    %v626 = vadd.f32 %v625, 1.0
    %v627 = vrcp.pop %v626
    %v628 = vmul.f32 %v626, %v627
    %v629 = vsub.f32 1.0, %v628
    %v630 = vmul.f32 %v627, %v629
    %v631 = vadd.f32 %v627, %v630
    %vm632 = vweird.f32 %v626
    %vm633 = vweird.f32 %v627
    %vm634 = vmor %vm632, %vm633
    %v635 = vsel %vm634, %v627, %v631
    %v636 = vand.u32 2147483647, %v626
    %vm637 = vcmp.eq.f32.partialorder %v636, 8.507059e+37
    %v638 = vand.u32 %v626, 2147483648
    %v639 = vor.u32 1.1754944e-38, %v638
    %v640 = vsel %vm637, %v639, %v635
    %v641 = vmul.f32 1.0, %v640
    %v642 = vtanh.pop %v622
    %v643 = vxor.u32 %v622, 2147483648
    %v644 = vmul.f32 %v643, 1.442695
    %v645 = vpow.pop %v644
    %v646 = vadd.f32 %v645, 1.0
    %v647 = vrcp.pop %v646
    %v648 = vmul.f32 %v646, %v647
    %v649 = vsub.f32 1.0, %v648
    %v650 = vmul.f32 %v647, %v649
    %v651 = vadd.f32 %v647, %v650
    %vm652 = vweird.f32 %v646
    %vm653 = vweird.f32 %v647
    %vm654 = vmor %vm652, %vm653
    %v655 = vsel %vm654, %v647, %v651
    %v656 = vand.u32 2147483647, %v646
    %vm657 = vcmp.eq.f32.partialorder %v656, 8.507059e+37
    %v658 = vand.u32 %v646, 2147483648
    %v659 = vor.u32 1.1754944e-38, %v658
    %v660 = vsel %vm657, %v659, %v655
    %v661 = vmul.f32 1.0, %v660
    %v662 = vmul.f32 %v641, %v573
    %v663 = vmul.f32 %v641, %v642
    %665 = vrot.lane.b32.xlu0 %v663, 64
    %v666 = vpop.permute.xlu0 %665
    %v668 = vadd.f32 %v662, %v666
    %v669 = vtanh.pop %v668
    %v670 = vmul.f32 %v661, %v669
    %672 = vrot.lane.b32.xlu0 %v670, 64
    %v673 = vpop.permute.xlu0 %672
    %v674 = vsel %vm292, %v673, 0
    %676 = vmatpush.msra.mxu0 0.0
    %677 = vmatpush.msra.mxu0 0.0
    %678 = vmatpush.msra.mxu0 0.0
    %679 = vmatpush.msra.mxu0 0.0
    %680 = vmatpush.msra.mxu0 0.0
    %681 = vmatpush.msra.mxu0 0.0
    %682 = vmatpush.msra.mxu0 0.0
    %683 = vmatpush.msra.mxu0 0.0
    %684 = vmatpush.msra.mxu0 %v169
    %685 = vmatpush.msra.mxu0 %v167
    %686 = vmatpush.msra.mxu0 %v165
    %687 = vmatpush.msra.mxu0 %v163
    %688 = vmatpush.msra.mxu0 %v161
    %689 = vmatpush.msra.mxu0 %v159
    %690 = vmatpush.msra.mxu0 %v157
    %691 = vmatpush.msra.mxu0 %v155
    %692 = vmatmul.f32.gmra.mxu0 %v674
    %v693 = vpop.f32.mrf.mxu0
    %v694 = vadd.f32 0.0, %v693
    %695 = vdwg.mxu0
    %696 = vmatpush.msra.mxu0 0.0
    %697 = vmatpush.msra.mxu0 0.0
    %698 = vmatpush.msra.mxu0 0.0
    %699 = vmatpush.msra.mxu0 0.0
    %700 = vmatpush.msra.mxu0 0.0
    %701 = vmatpush.msra.mxu0 0.0
    %702 = vmatpush.msra.mxu0 0.0
    %703 = vmatpush.msra.mxu0 0.0
    %704 = vmatpush.msra.mxu0 %v170
    %705 = vmatpush.msra.mxu0 %v168
    %706 = vmatpush.msra.mxu0 %v166
    %707 = vmatpush.msra.mxu0 %v164
    %708 = vmatpush.msra.mxu0 %v162
    %709 = vmatpush.msra.mxu0 %v160
    %710 = vmatpush.msra.mxu0 %v158
    %711 = vmatpush.msra.mxu0 %v156
    %712 = vmatmul.f32.gmra.mxu0 %v674
    %v713 = vpop.f32.mrf.mxu0
    %v714 = vadd.f32 0.0, %v713
    %715 = vdwg.mxu0
    %v716 = vadd.f32 %v240, %v694
    %v717 = vadd.f32 %v281, %v714
    %v718 = vxor.u32 %v716, 2147483648
    %v719 = vmul.f32 %v718, 1.442695
    %v720 = vpow.pop %v719
    %v721 = vadd.f32 %v720, 1.0
    %v722 = vrcp.pop %v721
    %v723 = vmul.f32 %v721, %v722
    %v724 = vsub.f32 1.0, %v723
    %v725 = vmul.f32 %v722, %v724
    %v726 = vadd.f32 %v722, %v725
    %vm727 = vweird.f32 %v721
    %vm728 = vweird.f32 %v722
    %vm729 = vmor %vm727, %vm728
    %v730 = vsel %vm729, %v722, %v726
    %v731 = vand.u32 2147483647, %v721
    %vm732 = vcmp.eq.f32.partialorder %v731, 8.507059e+37
    %v733 = vand.u32 %v721, 2147483648
    %v734 = vor.u32 1.1754944e-38, %v733
    %v735 = vsel %vm732, %v734, %v730
    %v736 = vmul.f32 1.0, %v735
    %v737 = vtanh.pop %v717
    %v738 = vxor.u32 %v717, 2147483648
    %v739 = vmul.f32 %v738, 1.442695
    %v740 = vpow.pop %v739
    %v741 = vadd.f32 %v740, 1.0
    %v742 = vrcp.pop %v741
    %v743 = vmul.f32 %v741, %v742
    %v744 = vsub.f32 1.0, %v743
    %v745 = vmul.f32 %v742, %v744
    %v746 = vadd.f32 %v742, %v745
    %vm747 = vweird.f32 %v741
    %vm748 = vweird.f32 %v742
    %vm749 = vmor %vm747, %vm748
    %v750 = vsel %vm749, %v742, %v746
    %v751 = vand.u32 2147483647, %v741
    %vm752 = vcmp.eq.f32.partialorder %v751, 8.507059e+37
    %v753 = vand.u32 %v741, 2147483648
    %v754 = vor.u32 1.1754944e-38, %v753
    %v755 = vsel %vm752, %v754, %v750
    %v756 = vmul.f32 1.0, %v755
    %v757 = vmul.f32 %v736, %v668
    %v758 = vmul.f32 %v736, %v737
    %760 = vrot.lane.b32.xlu0 %v758, 64
    %v761 = vpop.permute.xlu0 %760
    %v763 = vadd.f32 %v757, %v761
    %v764 = vtanh.pop %v763
    %v765 = vmul.f32 %v756, %v764
    %767 = vrot.lane.b32.xlu0 %v765, 64
    %v768 = vpop.permute.xlu0 %767
    %v769 = vsel %vm292, %v768, 0
    %771 = vmatpush.msra.mxu0 0.0
    %772 = vmatpush.msra.mxu0 0.0
    %773 = vmatpush.msra.mxu0 0.0
    %774 = vmatpush.msra.mxu0 0.0
    %775 = vmatpush.msra.mxu0 0.0
    %776 = vmatpush.msra.mxu0 0.0
    %777 = vmatpush.msra.mxu0 0.0
    %778 = vmatpush.msra.mxu0 0.0
    %779 = vmatpush.msra.mxu0 %v169
    %780 = vmatpush.msra.mxu0 %v167
    %781 = vmatpush.msra.mxu0 %v165
    %782 = vmatpush.msra.mxu0 %v163
    %783 = vmatpush.msra.mxu0 %v161
    %784 = vmatpush.msra.mxu0 %v159
    %785 = vmatpush.msra.mxu0 %v157
    %786 = vmatpush.msra.mxu0 %v155
    %787 = vmatmul.f32.gmra.mxu0 %v769
    %v788 = vpop.f32.mrf.mxu0
    %v789 = vadd.f32 0.0, %v788
    %790 = vdwg.mxu0
    %791 = vmatpush.msra.mxu0 0.0
    %792 = vmatpush.msra.mxu0 0.0
    %793 = vmatpush.msra.mxu0 0.0
    %794 = vmatpush.msra.mxu0 0.0
    %795 = vmatpush.msra.mxu0 0.0
    %796 = vmatpush.msra.mxu0 0.0
    %797 = vmatpush.msra.mxu0 0.0
    %798 = vmatpush.msra.mxu0 0.0
    %799 = vmatpush.msra.mxu0 %v170
    %800 = vmatpush.msra.mxu0 %v168
    %801 = vmatpush.msra.mxu0 %v166
    %802 = vmatpush.msra.mxu0 %v164
    %803 = vmatpush.msra.mxu0 %v162
    %804 = vmatpush.msra.mxu0 %v160
    %805 = vmatpush.msra.mxu0 %v158
    %806 = vmatpush.msra.mxu0 %v156
    %807 = vmatmul.f32.gmra.mxu0 %v769
    %v808 = vpop.f32.mrf.mxu0
    %v809 = vadd.f32 0.0, %v808
    %810 = vdwg.mxu0
    %v811 = vadd.f32 %v243, %v789
    %v812 = vadd.f32 %v284, %v809
    %v813 = vxor.u32 %v811, 2147483648
    %v814 = vmul.f32 %v813, 1.442695
    %v815 = vpow.pop %v814
    %v816 = vadd.f32 %v815, 1.0
    %v817 = vrcp.pop %v816
    %v818 = vmul.f32 %v816, %v817
    %v819 = vsub.f32 1.0, %v818
    %v820 = vmul.f32 %v817, %v819
    %v821 = vadd.f32 %v817, %v820
    %vm822 = vweird.f32 %v816
    %vm823 = vweird.f32 %v817
    %vm824 = vmor %vm822, %vm823
    %v825 = vsel %vm824, %v817, %v821
    %v826 = vand.u32 2147483647, %v816
    %vm827 = vcmp.eq.f32.partialorder %v826, 8.507059e+37
    %v828 = vand.u32 %v816, 2147483648
    %v829 = vor.u32 1.1754944e-38, %v828
    %v830 = vsel %vm827, %v829, %v825
    %v831 = vmul.f32 1.0, %v830
    %v832 = vtanh.pop %v812
    %v833 = vxor.u32 %v812, 2147483648
    %v834 = vmul.f32 %v833, 1.442695
    %v835 = vpow.pop %v834
    %v836 = vadd.f32 %v835, 1.0
    %v837 = vrcp.pop %v836
    %v838 = vmul.f32 %v836, %v837
    %v839 = vsub.f32 1.0, %v838
    %v840 = vmul.f32 %v837, %v839
    %v841 = vadd.f32 %v837, %v840
    %vm842 = vweird.f32 %v836
    %vm843 = vweird.f32 %v837
    %vm844 = vmor %vm842, %vm843
    %v845 = vsel %vm844, %v837, %v841
    %v846 = vand.u32 2147483647, %v836
    %vm847 = vcmp.eq.f32.partialorder %v846, 8.507059e+37
    %v848 = vand.u32 %v836, 2147483648
    %v849 = vor.u32 1.1754944e-38, %v848
    %v850 = vsel %vm847, %v849, %v845
    %v851 = vmul.f32 1.0, %v850
    %v852 = vmul.f32 %v831, %v763
    %v853 = vmul.f32 %v831, %v832
    %855 = vrot.lane.b32.xlu0 %v853, 64
    %v856 = vpop.permute.xlu0 %855
    %v858 = vadd.f32 %v852, %v856
    %v859 = vtanh.pop %v858
    %v860 = vmul.f32 %v851, %v859
    %862 = vrot.lane.b32.xlu0 %v860, 64
    %v863 = vpop.permute.xlu0 %862
    %v864 = vsel %vm292, %v863, 0
    %866 = vmatpush.msra.mxu0 0.0
    %867 = vmatpush.msra.mxu0 0.0
    %868 = vmatpush.msra.mxu0 0.0
    %869 = vmatpush.msra.mxu0 0.0
    %870 = vmatpush.msra.mxu0 0.0
    %871 = vmatpush.msra.mxu0 0.0
    %872 = vmatpush.msra.mxu0 0.0
    %873 = vmatpush.msra.mxu0 0.0
    %874 = vmatpush.msra.mxu0 %v169
    %875 = vmatpush.msra.mxu0 %v167
    %876 = vmatpush.msra.mxu0 %v165
    %877 = vmatpush.msra.mxu0 %v163
    %878 = vmatpush.msra.mxu0 %v161
    %879 = vmatpush.msra.mxu0 %v159
    %880 = vmatpush.msra.mxu0 %v157
    %881 = vmatpush.msra.mxu0 %v155
    %882 = vmatmul.f32.gmra.mxu0 %v864
    %v883 = vpop.f32.mrf.mxu0
    %v884 = vadd.f32 0.0, %v883
    %885 = vdwg.mxu0
    %886 = vmatpush.msra.mxu0 0.0
    %887 = vmatpush.msra.mxu0 0.0
    %888 = vmatpush.msra.mxu0 0.0
    %889 = vmatpush.msra.mxu0 0.0
    %890 = vmatpush.msra.mxu0 0.0
    %891 = vmatpush.msra.mxu0 0.0
    %892 = vmatpush.msra.mxu0 0.0
    %893 = vmatpush.msra.mxu0 0.0
    %894 = vmatpush.msra.mxu0 %v170
    %895 = vmatpush.msra.mxu0 %v168
    %896 = vmatpush.msra.mxu0 %v166
    %897 = vmatpush.msra.mxu0 %v164
    %898 = vmatpush.msra.mxu0 %v162
    %899 = vmatpush.msra.mxu0 %v160
    %900 = vmatpush.msra.mxu0 %v158
    %901 = vmatpush.msra.mxu0 %v156
    %902 = vmatmul.f32.gmra.mxu0 %v864
    %v903 = vpop.f32.mrf.mxu0
    %v904 = vadd.f32 0.0, %v903
    %905 = vdwg.mxu0
    %v906 = vadd.f32 %v246, %v884
    %v907 = vadd.f32 %v287, %v904
    %v908 = vxor.u32 %v906, 2147483648
    %v909 = vmul.f32 %v908, 1.442695
    %v910 = vpow.pop %v909
    %v911 = vadd.f32 %v910, 1.0
    %v912 = vrcp.pop %v911
    %v913 = vmul.f32 %v911, %v912
    %v914 = vsub.f32 1.0, %v913
    %v915 = vmul.f32 %v912, %v914
    %v916 = vadd.f32 %v912, %v915
    %vm917 = vweird.f32 %v911
    %vm918 = vweird.f32 %v912
    %vm919 = vmor %vm917, %vm918
    %v920 = vsel %vm919, %v912, %v916
    %v921 = vand.u32 2147483647, %v911
    %vm922 = vcmp.eq.f32.partialorder %v921, 8.507059e+37
    %v923 = vand.u32 %v911, 2147483648
    %v924 = vor.u32 1.1754944e-38, %v923
    %v925 = vsel %vm922, %v924, %v920
    %v926 = vmul.f32 1.0, %v925
    %v927 = vtanh.pop %v907
    %v928 = vxor.u32 %v907, 2147483648
    %v929 = vmul.f32 %v928, 1.442695
    %v930 = vpow.pop %v929
    %v931 = vadd.f32 %v930, 1.0
    %v932 = vrcp.pop %v931
    %v933 = vmul.f32 %v931, %v932
    %v934 = vsub.f32 1.0, %v933
    %v935 = vmul.f32 %v932, %v934
    %v936 = vadd.f32 %v932, %v935
    %vm937 = vweird.f32 %v931
    %vm938 = vweird.f32 %v932
    %vm939 = vmor %vm937, %vm938
    %v940 = vsel %vm939, %v932, %v936
    %v941 = vand.u32 2147483647, %v931
    %vm942 = vcmp.eq.f32.partialorder %v941, 8.507059e+37
    %v943 = vand.u32 %v931, 2147483648
    %v944 = vor.u32 1.1754944e-38, %v943
    %v945 = vsel %vm942, %v944, %v940
    %v946 = vmul.f32 1.0, %v945
    %v947 = vmul.f32 %v926, %v858
    %v948 = vmul.f32 %v926, %v927
    %950 = vrot.lane.b32.xlu0 %v948, 64
    %v951 = vpop.permute.xlu0 %950
    %v953 = vadd.f32 %v947, %v951
    %v954 = vtanh.pop %v953
    %v955 = vmul.f32 %v946, %v954
    %957 = vrot.lane.b32.xlu0 %v955, 64
    %v958 = vpop.permute.xlu0 %957
    %v959 = vsel %vm292, %v958, 0
    %961 = vmatpush.msra.mxu0 0.0
    %962 = vmatpush.msra.mxu0 0.0
    %963 = vmatpush.msra.mxu0 0.0
    %964 = vmatpush.msra.mxu0 0.0
    %965 = vmatpush.msra.mxu0 0.0
    %966 = vmatpush.msra.mxu0 0.0
    %967 = vmatpush.msra.mxu0 0.0
    %968 = vmatpush.msra.mxu0 0.0
    %969 = vmatpush.msra.mxu0 %v169
    %970 = vmatpush.msra.mxu0 %v167
    %971 = vmatpush.msra.mxu0 %v165
    %972 = vmatpush.msra.mxu0 %v163
    %973 = vmatpush.msra.mxu0 %v161
    %974 = vmatpush.msra.mxu0 %v159
    %975 = vmatpush.msra.mxu0 %v157
    %976 = vmatpush.msra.mxu0 %v155
    %977 = vmatmul.f32.gmra.mxu0 %v959
    %v978 = vpop.f32.mrf.mxu0
    %v979 = vadd.f32 0.0, %v978
    %980 = vdwg.mxu0
    %981 = vmatpush.msra.mxu0 0.0
    %982 = vmatpush.msra.mxu0 0.0
    %983 = vmatpush.msra.mxu0 0.0
    %984 = vmatpush.msra.mxu0 0.0
    %985 = vmatpush.msra.mxu0 0.0
    %986 = vmatpush.msra.mxu0 0.0
    %987 = vmatpush.msra.mxu0 0.0
    %988 = vmatpush.msra.mxu0 0.0
    %989 = vmatpush.msra.mxu0 %v170
    %990 = vmatpush.msra.mxu0 %v168
    %991 = vmatpush.msra.mxu0 %v166
    %992 = vmatpush.msra.mxu0 %v164
    %993 = vmatpush.msra.mxu0 %v162
    %994 = vmatpush.msra.mxu0 %v160
    %995 = vmatpush.msra.mxu0 %v158
    %996 = vmatpush.msra.mxu0 %v156
    %997 = vmatmul.f32.gmra.mxu0 %v959
    %v998 = vpop.f32.mrf.mxu0
    %v999 = vadd.f32 0.0, %v998
    %1000 = vdwg.mxu0
    %v1001 = vadd.f32 %v249, %v979
    %v1002 = vadd.f32 %v290, %v999
    %v1003 = vxor.u32 %v1001, 2147483648
    %v1004 = vmul.f32 %v1003, 1.442695
    %v1005 = vpow.pop %v1004
    %v1006 = vadd.f32 %v1005, 1.0
    %v1007 = vrcp.pop %v1006
    %v1008 = vmul.f32 %v1006, %v1007
    %v1009 = vsub.f32 1.0, %v1008
    %v1010 = vmul.f32 %v1007, %v1009
    %v1011 = vadd.f32 %v1007, %v1010
    %vm1012 = vweird.f32 %v1006
    %vm1013 = vweird.f32 %v1007
    %vm1014 = vmor %vm1012, %vm1013
    %v1015 = vsel %vm1014, %v1007, %v1011
    %v1016 = vand.u32 2147483647, %v1006
    %vm1017 = vcmp.eq.f32.partialorder %v1016, 8.507059e+37
    %v1018 = vand.u32 %v1006, 2147483648
    %v1019 = vor.u32 1.1754944e-38, %v1018
    %v1020 = vsel %vm1017, %v1019, %v1015
    %v1021 = vmul.f32 1.0, %v1020
    %v1022 = vtanh.pop %v1002
    %v1023 = vxor.u32 %v1002, 2147483648
    %v1024 = vmul.f32 %v1023, 1.442695
    %v1025 = vpow.pop %v1024
    %v1026 = vadd.f32 %v1025, 1.0
    %v1027 = vrcp.pop %v1026
    %v1028 = vmul.f32 %v1026, %v1027
    %v1029 = vsub.f32 1.0, %v1028
    %v1030 = vmul.f32 %v1027, %v1029
    %v1031 = vadd.f32 %v1027, %v1030
    %vm1032 = vweird.f32 %v1026
    %vm1033 = vweird.f32 %v1027
    %vm1034 = vmor %vm1032, %vm1033
    %v1035 = vsel %vm1034, %v1027, %v1031
    %v1036 = vand.u32 2147483647, %v1026
    %vm1037 = vcmp.eq.f32.partialorder %v1036, 8.507059e+37
    %v1038 = vand.u32 %v1026, 2147483648
    %v1039 = vor.u32 1.1754944e-38, %v1038
    %v1040 = vsel %vm1037, %v1039, %v1035
    %v1041 = vmul.f32 1.0, %v1040
    %v1042 = vmul.f32 %v1021, %v953
    %v1043 = vmul.f32 %v1021, %v1022
    %1045 = vrot.lane.b32.xlu0 %v1043, 64
    %v1046 = vpop.permute.xlu0 %1045
    %v1048 = vadd.f32 %v1042, %v1046
    %v1049 = vtanh.pop %v1048
    %v1050 = vmul.f32 %v1041, %v1049
    %1052 = vrot.lane.b32.xlu0 %v1050, 64
    %v1053 = vpop.permute.xlu0 %1052
    %1056 = vrot.lane.b32.xlu0 %v154, 64
    %v1057 = vpop.permute.xlu0 %1056
    %1059 = vrot.lane.b32.xlu0 %v154, 56
    %v1060 = vpop.permute.xlu0 %1059
    %v1062 = vsel %vm292, %v1053, %v1057
    %vm1063 = vcmask 588800
    %v1064 = vsel %vm1063, %v1062, %v1060
    %v1065 = vld [vmem:[#allocation2 + $0xa0] sm:$0xff]
    %v1066 = vld [vmem:[#allocation2 + $0xb0] sm:$0xff]
    %v1067 = vld [vmem:[#allocation2 + $0xc0] sm:$0xff]
    %v1068 = vld [vmem:[#allocation2 + $0xd0] sm:$0xff]
    %v1069 = vld [vmem:[#allocation2 + $0xe0] sm:$0xff]
    %v1070 = vld [vmem:[#allocation2 + $0xf0] sm:$0xff]
    %v1071 = vld [vmem:[#allocation2 + $0x100] sm:$0xff]
    %v1072 = vld [vmem:[#allocation2 + $0x110] sm:$0xff]
    %v1073 = vld [vmem:[#allocation2 + $0x120] sm:$0xff]
    %v1074 = vld [vmem:[#allocation2 + $0x130] sm:$0xff]
    %v1075 = vld [vmem:[#allocation2 + $0x140] ss:$0 sm:$0xff]
    %vm1076 = vcmask 654336
    %v1078 = vsel %vm1076, %v1064, 0
    %1080 = vmatpush.msra.mxu0 0.0
    %1081 = vmatpush.msra.mxu0 0.0
    %1082 = vmatpush.msra.mxu0 0.0
    %1083 = vmatpush.msra.mxu0 0.0
    %1084 = vmatpush.msra.mxu0 0.0
    %1085 = vmatpush.msra.mxu0 0.0
    %1086 = vmatpush.msra.mxu0 %v1074
    %1087 = vmatpush.msra.mxu0 %v1073
    %1088 = vmatpush.msra.mxu0 %v1072
    %1089 = vmatpush.msra.mxu0 %v1071
    %1090 = vmatpush.msra.mxu0 %v1070
    %1091 = vmatpush.msra.mxu0 %v1069
    %1092 = vmatpush.msra.mxu0 %v1068
    %1093 = vmatpush.msra.mxu0 %v1067
    %1094 = vmatpush.msra.mxu0 %v1066
    %1095 = vmatpush.msra.mxu0 %v1065
    %1096 = vmatmul.f32.gmra.mxu0 %v1078
    %v1097 = vpop.f32.mrf.mxu0
    %v1098 = vadd.f32 %v1075, %v1097
    %1099 = vdwg.mxu0
    %v1100 = vmax.f32 %v1098, 0.0
    %v1101 = vld [vmem:[#allocation2 + $0x150] sm:$0xff]
    %v1102 = vld [vmem:[#allocation2 + $0x160] sm:$0xff]
    %v1103 = vld [vmem:[#allocation2 + $0x170] sm:$0xff]
    %v1104 = vld [vmem:[#allocation2 + $0x180] sm:$0xff]
    %v1105 = vld [vmem:[#allocation2 + $0x190] sm:$0xff]
    %v1106 = vld [vmem:[#allocation2 + $0x1a0] sm:$0xff]
    %v1107 = vld [vmem:[#allocation2 + $0x1b0] sm:$0xff]
    %v1108 = vld [vmem:[#allocation2 + $0x1c0] sm:$0xff]
    %v1109 = vld [vmem:[#allocation2 + $0x1d0] ss:$0 sm:$0xff]
    %v1111 = vsel %vm292, %v1100, 0
    %1113 = vmatpush.msra.mxu0 0.0
    %1114 = vmatpush.msra.mxu0 0.0
    %1115 = vmatpush.msra.mxu0 0.0
    %1116 = vmatpush.msra.mxu0 0.0
    %1117 = vmatpush.msra.mxu0 0.0
    %1118 = vmatpush.msra.mxu0 0.0
    %1119 = vmatpush.msra.mxu0 0.0
    %1120 = vmatpush.msra.mxu0 0.0
    %1121 = vmatpush.msra.mxu0 %v1108
    %1122 = vmatpush.msra.mxu0 %v1107
    %1123 = vmatpush.msra.mxu0 %v1106
    %1124 = vmatpush.msra.mxu0 %v1105
    %1125 = vmatpush.msra.mxu0 %v1104
    %1126 = vmatpush.msra.mxu0 %v1103
    %1127 = vmatpush.msra.mxu0 %v1102
    %1128 = vmatpush.msra.mxu0 %v1101
    %1129 = vmatmul.f32.gmra.mxu0 %v1111
    %v1130 = vpop.f32.mrf.mxu0
    %v1131 = vadd.f32 %v1109, %v1130
    %1132 = vdwg.mxu0
    %v1133 = vmax.f32 %v1131, 0.0
    %v1134 = vld [vmem:[#allocation2 + $0x1e0] sm:$0xff]
    %v1135 = vld [vmem:[#allocation2 + $0x1f0] sm:$0xff]
    %v1136 = vld [vmem:[#allocation2 + $0x200] sm:$0xff]
    %v1137 = vld [vmem:[#allocation2 + $0x210] sm:$0xff]
    %v1138 = vld [vmem:[#allocation2 + $0x220] sm:$0xff]
    %v1139 = vld [vmem:[#allocation2 + $0x230] sm:$0xff]
    %v1140 = vld [vmem:[#allocation2 + $0x240] sm:$0xff]
    %v1141 = vld [vmem:[#allocation2 + $0x250] sm:$0xff]
    %v1142 = vld [vmem:[#allocation2 + $0x260] ss:$0 sm:$0xff]
    %v1144 = vsel %vm292, %v1133, 0
    %1146 = vmatpush.msra.mxu0 0.0
    %1147 = vmatpush.msra.mxu0 0.0
    %1148 = vmatpush.msra.mxu0 0.0
    %1149 = vmatpush.msra.mxu0 0.0
    %1150 = vmatpush.msra.mxu0 0.0
    %1151 = vmatpush.msra.mxu0 0.0
    %1152 = vmatpush.msra.mxu0 0.0
    %1153 = vmatpush.msra.mxu0 0.0
    %1154 = vmatpush.msra.mxu0 %v1141
    %1155 = vmatpush.msra.mxu0 %v1140
    %1156 = vmatpush.msra.mxu0 %v1139
    %1157 = vmatpush.msra.mxu0 %v1138
    %1158 = vmatpush.msra.mxu0 %v1137
    %1159 = vmatpush.msra.mxu0 %v1136
    %1160 = vmatpush.msra.mxu0 %v1135
    %1161 = vmatpush.msra.mxu0 %v1134
    %1162 = vmatmul.f32.gmra.mxu0 %v1144
    %v1163 = vpop.f32.mrf.mxu0
    %v1164 = vadd.f32 %v1142, %v1163
    %1165 = vdwg.mxu0
    %v1166 = vxor.u32 %v1164, 2147483648
    %v1167 = vmul.f32 %v1166, 1.442695
    %v1168 = vpow.pop %v1167
    %v1169 = vadd.f32 %v1168, 1.0
    %v1170 = vrcp.pop %v1169
    %v1171 = vmul.f32 %v1169, %v1170
    %v1172 = vsub.f32 1.0, %v1171
    %v1173 = vmul.f32 %v1170, %v1172
    %v1174 = vadd.f32 %v1170, %v1173
    %vm1175 = vweird.f32 %v1169
    %vm1176 = vweird.f32 %v1170
    %vm1177 = vmor %vm1175, %vm1176
    %v1178 = vsel %vm1177, %v1170, %v1174
    %v1179 = vand.u32 2147483647, %v1169
    %vm1180 = vcmp.eq.f32.partialorder %v1179, 8.507059e+37
    %v1181 = vand.u32 %v1169, 2147483648
    %v1182 = vor.u32 1.1754944e-38, %v1181
    %v1183 = vsel %vm1180, %v1182, %v1178
    %v1184 = vmul.f32 1.0, %v1183
    %v1185 = vld [vmem:[%s2] sm:$0xff]
    %1187 = vrot.lane.b32.xlu0 %v1185, 127
    %v1188 = vpop.permute.xlu0 %1187
    %v1190 = vadd.f32 %v1185, %v1188
    %1191 = vrot.lane.b32.xlu0 %v1185, 126
    %v1192 = vpop.permute.xlu0 %1191
    %v1194 = vadd.f32 %v1190, %v1192
    %1195 = vrot.lane.b32.xlu0 %v1185, 125
    %v1196 = vpop.permute.xlu0 %1195
    %v1198 = vadd.f32 %v1194, %v1196
    %1199 = vrot.lane.b32.xlu0 %v1185, 124
    %v1200 = vpop.permute.xlu0 %1199
    %v1202 = vadd.f32 %v1198, %v1200
    %vm1203 = vcmp.eq.f32.partialorder %v1202, 0.0
    %v1204 = vsel %vm1203, 1.0, %v1202
    %v1205 = vmul.f32 %v1184, %v1192
    %1207 = vrot.lane.b32.xlu0 %v1205, 127
    %v1208 = vpop.permute.xlu0 %1207
    %v1210 = vadd.f32 %v1205, %v1208
    %v1211 = vmul.f32 %v1210, %v1185
    %v1212 = vrcp.pop %v1204
    %v1213 = vmul.f32 %v1204, %v1212
    %v1214 = vsub.f32 1.0, %v1213
    %v1215 = vmul.f32 %v1212, %v1214
    %v1216 = vadd.f32 %v1212, %v1215
    %vm1217 = vweird.f32 %v1204
    %vm1218 = vweird.f32 %v1212
    %vm1219 = vmor %vm1217, %vm1218
    %v1220 = vsel %vm1219, %v1212, %v1216
    %v1221 = vand.u32 2147483647, %v1204
    %vm1222 = vcmp.eq.f32.partialorder %v1221, 8.507059e+37
    %v1223 = vand.u32 %v1204, 2147483648
    %v1224 = vor.u32 1.1754944e-38, %v1223
    %v1225 = vsel %vm1222, %v1224, %v1220
    %v1226 = vmul.f32 %v1211, %v1225
    %v1227 = vsub.f32 %v1185, %v1226
    %1229 = vrot.lane.b32.xlu0 %v1226, 1
    %v1230 = vpop.permute.xlu0 %1229
    %v1232 = vadd.f32 %v1185, %v1230
    %v1233 = vmul.f32 %v1185, 0.2
    %v1234 = vsub.f32 %v1232, %v1233
    %v1235 = vmul.f32 %v1185, 0.12
    %1237 = vrot.lane.b32.xlu0 %v1235, 1
    %v1238 = vpop.permute.xlu0 %1237
    %v1240 = vadd.f32 %v1185, %v1238
    %v1241 = vmul.f32 %v1185, 0.14285715
    %v1242 = vsub.f32 %v1240, %v1241
    %v1243 = vmul.f32 %v1185, 0.08
    %1245 = vrot.lane.b32.xlu0 %v1243, 2
    %v1246 = vpop.permute.xlu0 %1245
    %v1248 = vadd.f32 %v1185, %v1246
    %v1249 = vmul.f32 %v1185, 0.1
    %v1250 = vsub.f32 %v1248, %v1249
    %1252 = vrot.lane.b32.xlu0 %v1241, 2
    %v1253 = vpop.permute.xlu0 %1252
    %v1255 = vadd.f32 %v1185, %v1253
    %1257 = vrot.lane.b32.xlu0 %v1249, 1
    %v1258 = vpop.permute.xlu0 %1257
    %v1260 = vadd.f32 %v1255, %v1258
    %1262 = vrot.lane.b32.xlu0 %v1184, 5
    %v1263 = vpop.permute.xlu0 %1262
    %vm1265 = vcmask 7168
    %v1266 = vsel %vm1265, %v1227, %v1234
    %vm1267 = vcmask 15360
    %v1268 = vsel %vm1267, %v1266, %v1242
    %vm1269 = vcmask 23552
    %v1270 = vsel %vm1269, %v1268, %v1250
    %vm1271 = vcmask 31744
    %v1272 = vsel %vm1271, %v1270, %v1260
    %v1273 = vsel %vm68, %v1272, %v1263
    %v1274 = vsel %vm111, %v1273, %v1263
    %vm1275 = vcmask 56320
    %v1276 = vsel %vm1275, %v1274, 0.0
    %vm1277 = vcmask 64512
    %1278 = vst.msk [vmem:[%s4] sm:$0xff] %vm1277, %v1276
    // Predicated region
    $region22: #{deep_hfmd_forward.1} parent=1 // pred_check
      _
    $region23: #{deep_hfmd_forward.1} parent=1 // pred_check_branch
      %1280 = sbr.rel (0) target = $region25
    $region24: #{deep_hfmd_forward.1} parent=1 // pred_region
      _
    $region25: #{deep_hfmd_forward.1} parent=1 // pred_fallthru
      _
    // Predicated region
    $region26: #{deep_hfmd_forward.1} parent=1 // pred_check
      _
    $region27: #{deep_hfmd_forward.1} parent=1 // pred_check_branch
      %1282 = sbr.rel (0) target = $region29
    $region28: #{deep_hfmd_forward.1} parent=1 // pred_region
      _
    $region29: #{deep_hfmd_forward.1} parent=1 // pred_fallthru
      _
    %1283 = vsyncpa [#allocation3], 1

</llo_original>
